<compile_context>
chip_gen: v5e
topology: v5e:2x2
jax: 0.10.0
libtpu: 0.0.40
codegen_flags: <defaults>
</compile_context>

<pallas_src>
import functools
import numpy as np
import jax
import jax.numpy as jnp
from jax.experimental import pallas as pl
from jax.experimental.pallas import tpu as pltpu

_PRIMES = (1, 2654435761, 805459861, 3674653429, 2097192037, 1434869437,
           2165219737)


def _grid_sizes(level, n_min, n_max):
    # float32 arithmetic to mirror torch's float32 tensor math.
    if level == 1:
        return [int(n_min)]
    n_min32 = np.float32(n_min)
    n_max32 = np.float32(n_max)
    b = np.float32(np.exp((np.log(n_max32) - np.log(n_min32)) /
                          np.float32(level - 1)))
    return [int(n_min32 * b ** np.float32(i)) for i in range(level)]


def _interp_matrix(out_size, in_size):
    """1-D matrix U such that out = U @ in reproduces torch bilinear
    interpolation with align_corners=False.  Shape [out_size, in_size]."""
    U = np.zeros((out_size, in_size), dtype=np.float32)
    scale = in_size / out_size
    for i in range(out_size):
        src = max(scale * (i + 0.5) - 0.5, 0.0)
        i0 = min(int(np.floor(src)), in_size - 1)
        i1 = min(i0 + 1, in_size - 1)
        w1 = src - i0
        U[i, i0] += 1.0 - w1
        U[i, i1] += w1
    return U


def _build_groups(grids, H, W):
    """Group consecutive levels that share a pooling kernel / coarse grid."""
    groups = []
    for lv, g in enumerate(grids):
        k_h, k_w = H // g, W // g
        assert k_h >= 1 and k_w >= 1, "grid size must not exceed spatial dims"
        Gh, Gw = H // k_h, W // k_w
        key = (k_h, k_w, Gh, Gw)
        if groups and groups[-1][1] == key:
            groups[-1][2].append(g)
        else:
            groups.append([lv, key, [g]])
    return [(lv0, key, tuple(gs)) for (lv0, key, gs) in groups]


def _vmem_limit(block_bytes):
    # double-buffered blocks + headroom, clamped to stay within every
    # generation's physical VMEM (v7x: 64 MiB per TensorCore).
    return int(min(max(4 * block_bytes + (8 << 20), 32 << 20), 64 << 20))


# ---------------------------------------------------------------------------
# Kernel A: all-level max-pool + XOR-prime hash (image loaded once per batch)
# ---------------------------------------------------------------------------
def _pool_hash_kernel(img_ref, *idx_refs, groups, C, mod_t, primes):
    # mod_t is a power of two, so the whole integer pipeline can run in
    # uint32 with natural wraparound and a final mask; this reproduces the
    # PyTorch int64 (mul, xor, % mod_t) result bit-exactly for inputs whose
    # scaled magnitude stays inside int32 range.
    mask = jnp.uint32(mod_t - 1)
    prs = [jnp.uint32(int(p) & 0xFFFFFFFF) for p in primes]

    for gi, (_lv0, (k_h, k_w, Gh, Gw), gs) in enumerate(groups):
        # Shared max-pooling for every level in this group (pooling commutes
        # exactly with the positive per-level scale g).  Per-channel to keep
        # vreg pressure low.
        pooled = []
        for c in range(C):
            if k_h == 1 and k_w == 1:
                pc = img_ref[c]                                   # [H, W]
            else:
                # max_pool2d drops trailing remainder rows/cols (stride==kernel)
                pc = img_ref[c, :Gh * k_h, :Gw * k_w]
                if k_h > 1:
                    # reduced axis on sublanes, lane dim untouched
                    pc = jnp.max(pc.reshape(Gh, k_h, Gw * k_w), axis=1)
                if k_w > 1:
                    # transpose so the W-pool reduction also sits on sublanes
                    # (avoids a lane-splitting reshape / lane-axis reduce)
                    pct = jnp.max(pc.T.reshape(Gw, k_w, Gh), axis=1)
                    pc = pct.T                                    # [Gh, Gw]
            pooled.append(pc)

        for li, g in enumerate(gs):
            gf = jnp.float32(g)
            # per-channel accumulation: no [C, Gh, Gw] uint32 temporary,
            # prime[0] == 1 multiply skipped.
            acc = (pooled[0] * gf).astype(jnp.int32).astype(jnp.uint32)
            if int(primes[0]) != 1:
                acc = acc * prs[0]
            for c in range(1, C):
                xc = (pooled[c] * gf).astype(jnp.int32).astype(jnp.uint32)
                acc = acc ^ (xc * prs[c])
            idx_refs[gi][li] = (acc & mask).astype(jnp.int32)     # [Gh, Gw]


def _pool_hash_all_levels(images, groups, mod_t, primes):
    B, C, H, W = images.shape
    out_shape = tuple(jax.ShapeDtypeStruct((len(gs), B, Gh, Gw), jnp.int32)
                      for (_lv0, (_kh, _kw, Gh, Gw), gs) in groups)
    out_specs = tuple(pl.BlockSpec((len(gs), None, Gh, Gw),
                                   lambda b: (0, b, 0, 0))
                      for (_lv0, (_kh, _kw, Gh, Gw), gs) in groups)
    block_bytes = C * H * W * 4 + sum(len(gs) * Gh * Gw * 4
                                      for (_lv0, (_kh, _kw, Gh, Gw), gs)
                                      in groups)
    kern = functools.partial(_pool_hash_kernel, groups=groups, C=C,
                             mod_t=mod_t, primes=primes)
    # TODO(synk): for very large images additionally tile along H (a multiple
    # of every group's k_h) to bound the per-step VMEM block on v7x.
    # TODO(synk): coarse idx outputs are not lane-dense (<128 last dim);
    # packing them into one lane-dense slab would avoid masked stores.
    return pl.pallas_call(
        kern,
        out_shape=out_shape,
        grid=(B,),
        in_specs=[pl.BlockSpec((None, C, H, W), lambda b: (b, 0, 0, 0))],
        out_specs=out_specs,
        compiler_params=pltpu.CompilerParams(
            dimension_semantics=("parallel",),
            vmem_limit_bytes=_vmem_limit(block_bytes)),
    )(images)


# ---------------------------------------------------------------------------
# Kernel B (fused, single call): bilinear upsample of every level, written
# directly into its channel slice of the final output.
# ---------------------------------------------------------------------------
def _fused_upsample_kernel(*refs, groups_meta, fd):
    o_ref = refs[-1]                                  # [fd, H, W]
    l = pl.program_id(1)                              # level index
    ptr = 0
    for (lv0, n_lv, Gh, Gw, identity) in groups_meta:
        f_ref = refs[ptr]
        ptr += 1
        if identity:
            uy_ref = None
            uxt_ref = None
        else:
            uy_ref = refs[ptr]
            uxt_ref = refs[ptr + 1]
            ptr += 2

        cond = jnp.logical_and(l >= lv0, l < lv0 + n_lv)

        @pl.when(cond)
        def _(f_ref=f_ref, uy_ref=uy_ref, uxt_ref=uxt_ref, Gh=Gh, Gw=Gw,
              identity=identity):
            f = f_ref[...]                            # [fd, Gh, Gw]
            if identity:
                # coarse grid already equals (H, W): pure copy path
                o_ref[...] = f
            else:
                # out[c] = Uy @ f[c] @ Ux^T as collapsed 2-D MXU matmuls:
                #   step 1: fold fd into M -> [fd*Gh, Gw] @ [Gw, W]
                s = jnp.dot(f.reshape(fd * Gh, Gw), uxt_ref[...],
                            preferred_element_type=jnp.float32)  # [fd*Gh, W]
                #   step 2: per-channel [H, Gh] @ [Gh, W] with shared
                #   (un-broadcast) Uy; M = H gives good MXU occupancy.
                # TODO(synk): optional bf16 inputs (f32 accum) for ~3x MXU
                # throughput on v6e/v7x once validated against the reference.
                uy = uy_ref[...]                      # [H, Gh]
                for c in range(fd):
                    o_ref[c] = jnp.dot(uy, s[c * Gh:(c + 1) * Gh, :],
                                       preferred_element_type=jnp.float32)


def _gather_and_upsample(idxs, table_t, groups, B, H, W, level, fd):
    in_specs = []
    args = []
    groups_meta = []
    block_bytes = fd * H * W * 4                      # output block
    for gi, (lv0, (_kh, _kw, Gh, Gw), gs) in enumerate(groups):
        n_lv = len(gs)
        tbl_g = table_t[lv0:lv0 + n_lv]               # [n_lv, fd, mod_t]
        # TODO(synk): fold this gather into the kernel (VMEM-resident
        # [fd, mod_t] level slice) to remove this HBM round trip entirely;
        # arbitrary-index in-kernel gather has no reliable Mosaic lowering yet.
        feats = jax.vmap(lambda t, i: jnp.take(t, i, axis=1))(tbl_g, idxs[gi])
        args.append(feats)                            # [n_lv, fd, B, Gh, Gw]
        in_specs.append(pl.BlockSpec(
            (None, fd, None, Gh, Gw),
            lambda b, l, lv0=lv0, n_lv=n_lv:
                (jnp.clip(l - lv0, 0, n_lv - 1), 0, b, 0, 0)))
        block_bytes += fd * Gh * Gw * 4

        identity = (Gh == H and Gw == W)
        if not identity:
            uy = jnp.asarray(_interp_matrix(H, Gh))   # [H, Gh]
            uxt = jnp.asarray(_interp_matrix(W, Gw).T)  # [Gw, W]
            args += [uy, uxt]
            in_specs += [pl.BlockSpec((H, Gh), lambda b, l: (0, 0)),
                         pl.BlockSpec((Gw, W), lambda b, l: (0, 0))]
            block_bytes += (H * Gh + Gw * W) * 4
        groups_meta.append((lv0, n_lv, Gh, Gw, identity))

    kern = functools.partial(_fused_upsample_kernel,
                             groups_meta=tuple(groups_meta), fd=fd)
    # TODO(synk): for very large H, W add a row-tile grid axis (out block
    # (fd, TH, W), Uy block (TH, Gh)) to bound VMEM on v7x.
    return pl.pallas_call(
        kern,
        out_shape=jax.ShapeDtypeStruct((B, level * fd, H, W), jnp.float32),
        grid=(B, level),
        in_specs=in_specs,
        out_specs=pl.BlockSpec((None, fd, H, W), lambda b, l: (b, l, 0, 0)),
        compiler_params=pltpu.CompilerParams(
            dimension_semantics=("parallel", "arbitrary"),
            vmem_limit_bytes=_vmem_limit(block_bytes)),
    )(*args)


# ---------------------------------------------------------------------------
# Forward pass
# ---------------------------------------------------------------------------
def multires_hash_encoding(images, hash_table, *, level=16, mod_t=2 ** 16,
                           feature_dim=3, n_min=4, n_max=256,
                           interpolation='bilinear'):
    assert interpolation == 'bilinear', "only bilinear interpolation supported"
    images = images.astype(jnp.float32)
    B, C, H, W = images.shape
    assert C == feature_dim, "input channels must equal feature_dim"
    assert mod_t & (mod_t - 1) == 0, "mod_t must be a power of two"
    assert hash_table.shape == (level, mod_t, feature_dim)
    assert feature_dim <= len(_PRIMES)

    primes = _PRIMES[:feature_dim]
    grids = _grid_sizes(level, n_min, n_max)
    groups = _build_groups(grids, H, W)

    # Kernel A: image read from HBM once per batch element; all-level hashes.
    idxs = _pool_hash_all_levels(images, groups, mod_t, primes)

    # Pre-transpose the table to [level, fd, mod_t]: fd on sublanes (tiny pad
    # 3->8) instead of lanes (3->128), and the downstream gather produces
    # [n_lv, fd, B, Gh, Gw] directly -> no per-level NCHW transpose.
    table_t = jnp.swapaxes(hash_table, 1, 2).astype(jnp.float32)

    # Kernel B: single fused call; each level's features are upsampled and
    # written straight into their channel slice (no concatenate).
    return _gather_and_upsample(idxs, table_t, groups, B, H, W, level,
                                feature_dim)


if __name__ == "__main__":
    # Small config consistent with the module (n_max must not exceed H, W so
    # that the reference max_pool2d kernel size stays >= 1).
    LEVEL, MOD_T, FEATURE_DIM, N_MIN, N_MAX = 4, 4096, 3, 4, 16
    B, H, W = 2, 16, 16

    key = jax.random.PRNGKey(0)
    k_img, k_tbl = jax.random.split(key)
    images = jax.random.uniform(k_img, (B, FEATURE_DIM, H, W),
                                dtype=jnp.float32)
    # nn.Parameter(torch.rand([...]) * 0.0002 - 0.0001), deterministic here.
    hash_table = (jax.random.uniform(k_tbl, (LEVEL, MOD_T, FEATURE_DIM),
                                     dtype=jnp.float32) * 0.0002 - 0.0001)

    fwd = jax.jit(functools.partial(
        multires_hash_encoding, level=LEVEL, mod_t=MOD_T,
        feature_dim=FEATURE_DIM, n_min=N_MIN, n_max=N_MAX))

    out = jax.block_until_ready(fwd(images, hash_table))
    assert out.shape == (B, LEVEL * FEATURE_DIM, H, W), out.shape
    assert out.dtype == jnp.float32
    assert bool(jnp.isfinite(out).all())
    print("KERNEL_OK")
</pallas_src>

<mosaic_0001>
module attributes {stable_mosaic.version = 11 : i64} {
  func.func @_pool_hash_kernel(%arg0: i32, %arg1: memref<1x3x16x16xf32, #tpu.memory_space<vmem>>, %arg2: memref<1x1x4x4xi32, #tpu.memory_space<vmem>>, %arg3: memref<1x1x8x8xi32, #tpu.memory_space<vmem>>, %arg4: memref<2x1x16x16xi32, #tpu.memory_space<vmem>>) attributes {dimension_semantics = [#tpu.dimension_semantics<parallel>], iteration_bounds = array<i64: 2>, scalar_prefetch = 0 : i64, scratch_operands = 0 : i64, tpu.core_type = #tpu.core_type<tc>, window_params = [{transform_indices = @transform_0, window_bounds = array<i64: 1, 3, 16, 16>}, {transform_indices = @transform_1, window_bounds = array<i64: 1, 1, 4, 4>}, {transform_indices = @transform_2, window_bounds = array<i64: 1, 1, 8, 8>}, {transform_indices = @transform_3, window_bounds = array<i64: 2, 1, 16, 16>}]} {
    %c0 = arith.constant 0 : index
    %c0_0 = arith.constant 0 : index
    %c0_1 = arith.constant 0 : index
    %c0_2 = arith.constant 0 : index
    %0 = vector.load %arg1[%c0, %c0_0, %c0_1, %c0_2] : memref<1x3x16x16xf32, #tpu.memory_space<vmem>>, vector<1x1x16x16xf32>
    %1 = vector.shape_cast %0 : vector<1x1x16x16xf32> to vector<16x16xf32>
    %2 = vector.shape_cast %1 : vector<16x16xf32> to vector<4x4x16xf32>
    %cst = arith.constant dense<0xFF800000> : vector<4x16xf32>
    %3 = vector.multi_reduction <maximumf>, %2, %cst [1] : vector<4x4x16xf32> to vector<4x16xf32>
    %4 = tpu.transpose %3, [1, 0] : vector<4x16xf32> -> vector<16x4xf32>
    %5 = vector.shape_cast %4 : vector<16x4xf32> to vector<4x4x4xf32>
    %cst_3 = arith.constant dense<0xFF800000> : vector<4x4xf32>
    %6 = vector.multi_reduction <maximumf>, %5, %cst_3 [1] : vector<4x4x4xf32> to vector<4x4xf32>
    %7 = tpu.transpose %6, [1, 0] : vector<4x4xf32> -> vector<4x4xf32>
    %c0_4 = arith.constant 0 : index
    %c1 = arith.constant 1 : index
    %c0_5 = arith.constant 0 : index
    %c0_6 = arith.constant 0 : index
    %8 = vector.load %arg1[%c0_4, %c1, %c0_5, %c0_6] : memref<1x3x16x16xf32, #tpu.memory_space<vmem>>, vector<1x1x16x16xf32>
    %9 = vector.shape_cast %8 : vector<1x1x16x16xf32> to vector<16x16xf32>
    %10 = vector.shape_cast %9 : vector<16x16xf32> to vector<4x4x16xf32>
    %cst_7 = arith.constant dense<0xFF800000> : vector<4x16xf32>
    %11 = vector.multi_reduction <maximumf>, %10, %cst_7 [1] : vector<4x4x16xf32> to vector<4x16xf32>
    %12 = tpu.transpose %11, [1, 0] : vector<4x16xf32> -> vector<16x4xf32>
    %13 = vector.shape_cast %12 : vector<16x4xf32> to vector<4x4x4xf32>
    %cst_8 = arith.constant dense<0xFF800000> : vector<4x4xf32>
    %14 = vector.multi_reduction <maximumf>, %13, %cst_8 [1] : vector<4x4x4xf32> to vector<4x4xf32>
    %15 = tpu.transpose %14, [1, 0] : vector<4x4xf32> -> vector<4x4xf32>
    %c0_9 = arith.constant 0 : index
    %c2 = arith.constant 2 : index
    %c0_10 = arith.constant 0 : index
    %c0_11 = arith.constant 0 : index
    %16 = vector.load %arg1[%c0_9, %c2, %c0_10, %c0_11] : memref<1x3x16x16xf32, #tpu.memory_space<vmem>>, vector<1x1x16x16xf32>
    %17 = vector.shape_cast %16 : vector<1x1x16x16xf32> to vector<16x16xf32>
    %18 = vector.shape_cast %17 : vector<16x16xf32> to vector<4x4x16xf32>
    %cst_12 = arith.constant dense<0xFF800000> : vector<4x16xf32>
    %19 = vector.multi_reduction <maximumf>, %18, %cst_12 [1] : vector<4x4x16xf32> to vector<4x16xf32>
    %20 = tpu.transpose %19, [1, 0] : vector<4x16xf32> -> vector<16x4xf32>
    %21 = vector.shape_cast %20 : vector<16x4xf32> to vector<4x4x4xf32>
    %cst_13 = arith.constant dense<0xFF800000> : vector<4x4xf32>
    %22 = vector.multi_reduction <maximumf>, %21, %cst_13 [1] : vector<4x4x4xf32> to vector<4x4xf32>
    %23 = tpu.transpose %22, [1, 0] : vector<4x4xf32> -> vector<4x4xf32>
    %cst_14 = arith.constant 4.000000e+00 : f32
    %24 = vector.broadcast %cst_14 : f32 to vector<4x4xf32>
    %25 = arith.mulf %7, %24 : vector<4x4xf32>
    %26 = arith.fptosi %25 : vector<4x4xf32> to vector<4x4xi32>
    %cst_15 = arith.constant 4.000000e+00 : f32
    %27 = vector.broadcast %cst_15 : f32 to vector<4x4xf32>
    %28 = arith.mulf %15, %27 : vector<4x4xf32>
    %29 = arith.fptosi %28 : vector<4x4xf32> to vector<4x4xi32>
    %c-1640531535_i32 = arith.constant -1640531535 : i32
    %30 = vector.broadcast %c-1640531535_i32 : i32 to vector<4x4xi32>
    %31 = arith.muli %29, %30 : vector<4x4xi32>
    %32 = arith.xori %26, %31 : vector<4x4xi32>
    %cst_16 = arith.constant 4.000000e+00 : f32
    %33 = vector.broadcast %cst_16 : f32 to vector<4x4xf32>
    %34 = arith.mulf %23, %33 : vector<4x4xf32>
    %35 = arith.fptosi %34 : vector<4x4xf32> to vector<4x4xi32>
    %c805459861_i32 = arith.constant 805459861 : i32
    %36 = vector.broadcast %c805459861_i32 : i32 to vector<4x4xi32>
    %37 = arith.muli %35, %36 : vector<4x4xi32>
    %38 = arith.xori %32, %37 : vector<4x4xi32>
    %c4095_i32 = arith.constant 4095 : i32
    %39 = vector.broadcast %c4095_i32 : i32 to vector<4x4xi32>
    %40 = arith.andi %38, %39 : vector<4x4xi32>
    %c0_17 = arith.constant 0 : index
    %c0_18 = arith.constant 0 : index
    %c0_19 = arith.constant 0 : index
    %c0_20 = arith.constant 0 : index
    %41 = vector.load %arg2[%c0_17, %c0_18, %c0_19, %c0_20] : memref<1x1x4x4xi32, #tpu.memory_space<vmem>>, vector<1x1x4x4xi32>
    %42 = vector.shape_cast %41 : vector<1x1x4x4xi32> to vector<4x4xi32>
    %43 = vector.shape_cast %40 : vector<4x4xi32> to vector<1x1x4x4xi32>
    tpu.vector_store %arg2[%c0_17, %c0_18, %c0_19, %c0_20], %43 {strides = array<i32>} : memref<1x1x4x4xi32, #tpu.memory_space<vmem>>, vector<1x1x4x4xi32>,
    %c0_21 = arith.constant 0 : index
    %c0_22 = arith.constant 0 : index
    %c0_23 = arith.constant 0 : index
    %c0_24 = arith.constant 0 : index
    %44 = vector.load %arg1[%c0_21, %c0_22, %c0_23, %c0_24] : memref<1x3x16x16xf32, #tpu.memory_space<vmem>>, vector<1x1x16x16xf32>
    %45 = vector.shape_cast %44 : vector<1x1x16x16xf32> to vector<16x16xf32>
    %46 = vector.shape_cast %45 : vector<16x16xf32> to vector<8x2x16xf32>
    %cst_25 = arith.constant dense<0xFF800000> : vector<8x16xf32>
    %47 = vector.multi_reduction <maximumf>, %46, %cst_25 [1] : vector<8x2x16xf32> to vector<8x16xf32>
    %48 = tpu.transpose %47, [1, 0] : vector<8x16xf32> -> vector<16x8xf32>
    %49 = vector.shape_cast %48 : vector<16x8xf32> to vector<8x2x8xf32>
    %cst_26 = arith.constant dense<0xFF800000> : vector<8x8xf32>
    %50 = vector.multi_reduction <maximumf>, %49, %cst_26 [1] : vector<8x2x8xf32> to vector<8x8xf32>
    %51 = tpu.transpose %50, [1, 0] : vector<8x8xf32> -> vector<8x8xf32>
    %c0_27 = arith.constant 0 : index
    %c1_28 = arith.constant 1 : index
    %c0_29 = arith.constant 0 : index
    %c0_30 = arith.constant 0 : index
    %52 = vector.load %arg1[%c0_27, %c1_28, %c0_29, %c0_30] : memref<1x3x16x16xf32, #tpu.memory_space<vmem>>, vector<1x1x16x16xf32>
    %53 = vector.shape_cast %52 : vector<1x1x16x16xf32> to vector<16x16xf32>
    %54 = vector.shape_cast %53 : vector<16x16xf32> to vector<8x2x16xf32>
    %cst_31 = arith.constant dense<0xFF800000> : vector<8x16xf32>
    %55 = vector.multi_reduction <maximumf>, %54, %cst_31 [1] : vector<8x2x16xf32> to vector<8x16xf32>
    %56 = tpu.transpose %55, [1, 0] : vector<8x16xf32> -> vector<16x8xf32>
    %57 = vector.shape_cast %56 : vector<16x8xf32> to vector<8x2x8xf32>
    %cst_32 = arith.constant dense<0xFF800000> : vector<8x8xf32>
    %58 = vector.multi_reduction <maximumf>, %57, %cst_32 [1] : vector<8x2x8xf32> to vector<8x8xf32>
    %59 = tpu.transpose %58, [1, 0] : vector<8x8xf32> -> vector<8x8xf32>
    %c0_33 = arith.constant 0 : index
    %c2_34 = arith.constant 2 : index
    %c0_35 = arith.constant 0 : index
    %c0_36 = arith.constant 0 : index
    %60 = vector.load %arg1[%c0_33, %c2_34, %c0_35, %c0_36] : memref<1x3x16x16xf32, #tpu.memory_space<vmem>>, vector<1x1x16x16xf32>
    %61 = vector.shape_cast %60 : vector<1x1x16x16xf32> to vector<16x16xf32>
    %62 = vector.shape_cast %61 : vector<16x16xf32> to vector<8x2x16xf32>
    %cst_37 = arith.constant dense<0xFF800000> : vector<8x16xf32>
    %63 = vector.multi_reduction <maximumf>, %62, %cst_37 [1] : vector<8x2x16xf32> to vector<8x16xf32>
    %64 = tpu.transpose %63, [1, 0] : vector<8x16xf32> -> vector<16x8xf32>
    %65 = vector.shape_cast %64 : vector<16x8xf32> to vector<8x2x8xf32>
    %cst_38 = arith.constant dense<0xFF800000> : vector<8x8xf32>
    %66 = vector.multi_reduction <maximumf>, %65, %cst_38 [1] : vector<8x2x8xf32> to vector<8x8xf32>
    %67 = tpu.transpose %66, [1, 0] : vector<8x8xf32> -> vector<8x8xf32>
    %cst_39 = arith.constant 6.000000e+00 : f32
    %68 = vector.broadcast %cst_39 : f32 to vector<8x8xf32>
    %69 = arith.mulf %51, %68 : vector<8x8xf32>
    %70 = arith.fptosi %69 : vector<8x8xf32> to vector<8x8xi32>
    %cst_40 = arith.constant 6.000000e+00 : f32
    %71 = vector.broadcast %cst_40 : f32 to vector<8x8xf32>
    %72 = arith.mulf %59, %71 : vector<8x8xf32>
    %73 = arith.fptosi %72 : vector<8x8xf32> to vector<8x8xi32>
    %c-1640531535_i32_41 = arith.constant -1640531535 : i32
    %74 = vector.broadcast %c-1640531535_i32_41 : i32 to vector<8x8xi32>
    %75 = arith.muli %73, %74 : vector<8x8xi32>
    %76 = arith.xori %70, %75 : vector<8x8xi32>
    %cst_42 = arith.constant 6.000000e+00 : f32
    %77 = vector.broadcast %cst_42 : f32 to vector<8x8xf32>
    %78 = arith.mulf %67, %77 : vector<8x8xf32>
    %79 = arith.fptosi %78 : vector<8x8xf32> to vector<8x8xi32>
    %c805459861_i32_43 = arith.constant 805459861 : i32
    %80 = vector.broadcast %c805459861_i32_43 : i32 to vector<8x8xi32>
    %81 = arith.muli %79, %80 : vector<8x8xi32>
    %82 = arith.xori %76, %81 : vector<8x8xi32>
    %c4095_i32_44 = arith.constant 4095 : i32
    %83 = vector.broadcast %c4095_i32_44 : i32 to vector<8x8xi32>
    %84 = arith.andi %82, %83 : vector<8x8xi32>
    %c0_45 = arith.constant 0 : index
    %c0_46 = arith.constant 0 : index
    %c0_47 = arith.constant 0 : index
    %c0_48 = arith.constant 0 : index
    %85 = vector.load %arg3[%c0_45, %c0_46, %c0_47, %c0_48] : memref<1x1x8x8xi32, #tpu.memory_space<vmem>>, vector<1x1x8x8xi32>
    %86 = vector.shape_cast %85 : vector<1x1x8x8xi32> to vector<8x8xi32>
    %87 = vector.shape_cast %84 : vector<8x8xi32> to vector<1x1x8x8xi32>
    tpu.vector_store %arg3[%c0_45, %c0_46, %c0_47, %c0_48], %87 {strides = array<i32>} : memref<1x1x8x8xi32, #tpu.memory_space<vmem>>, vector<1x1x8x8xi32>,
    %c0_49 = arith.constant 0 : index
    %c0_50 = arith.constant 0 : index
    %c0_51 = arith.constant 0 : index
    %c0_52 = arith.constant 0 : index
    %88 = vector.load %arg1[%c0_49, %c0_50, %c0_51, %c0_52] : memref<1x3x16x16xf32, #tpu.memory_space<vmem>>, vector<1x1x16x16xf32>
    %89 = vector.shape_cast %88 : vector<1x1x16x16xf32> to vector<16x16xf32>
    %c0_53 = arith.constant 0 : index
    %c1_54 = arith.constant 1 : index
    %c0_55 = arith.constant 0 : index
    %c0_56 = arith.constant 0 : index
    %90 = vector.load %arg1[%c0_53, %c1_54, %c0_55, %c0_56] : memref<1x3x16x16xf32, #tpu.memory_space<vmem>>, vector<1x1x16x16xf32>
    %91 = vector.shape_cast %90 : vector<1x1x16x16xf32> to vector<16x16xf32>
    %c0_57 = arith.constant 0 : index
    %c2_58 = arith.constant 2 : index
    %c0_59 = arith.constant 0 : index
    %c0_60 = arith.constant 0 : index
    %92 = vector.load %arg1[%c0_57, %c2_58, %c0_59, %c0_60] : memref<1x3x16x16xf32, #tpu.memory_space<vmem>>, vector<1x1x16x16xf32>
    %93 = vector.shape_cast %92 : vector<1x1x16x16xf32> to vector<16x16xf32>
    %cst_61 = arith.constant 1.000000e+01 : f32
    %94 = vector.broadcast %cst_61 : f32 to vector<16x16xf32>
    %95 = arith.mulf %89, %94 : vector<16x16xf32>
    %96 = arith.fptosi %95 : vector<16x16xf32> to vector<16x16xi32>
    %cst_62 = arith.constant 1.000000e+01 : f32
    %97 = vector.broadcast %cst_62 : f32 to vector<16x16xf32>
    %98 = arith.mulf %91, %97 : vector<16x16xf32>
    %99 = arith.fptosi %98 : vector<16x16xf32> to vector<16x16xi32>
    %c-1640531535_i32_63 = arith.constant -1640531535 : i32
    %100 = vector.broadcast %c-1640531535_i32_63 : i32 to vector<16x16xi32>
    %101 = arith.muli %99, %100 : vector<16x16xi32>
    %102 = arith.xori %96, %101 : vector<16x16xi32>
    %cst_64 = arith.constant 1.000000e+01 : f32
    %103 = vector.broadcast %cst_64 : f32 to vector<16x16xf32>
    %104 = arith.mulf %93, %103 : vector<16x16xf32>
    %105 = arith.fptosi %104 : vector<16x16xf32> to vector<16x16xi32>
    %c805459861_i32_65 = arith.constant 805459861 : i32
    %106 = vector.broadcast %c805459861_i32_65 : i32 to vector<16x16xi32>
    %107 = arith.muli %105, %106 : vector<16x16xi32>
    %108 = arith.xori %102, %107 : vector<16x16xi32>
    %c4095_i32_66 = arith.constant 4095 : i32
    %109 = vector.broadcast %c4095_i32_66 : i32 to vector<16x16xi32>
    %110 = arith.andi %108, %109 : vector<16x16xi32>
    %c0_67 = arith.constant 0 : index
    %c0_68 = arith.constant 0 : index
    %c0_69 = arith.constant 0 : index
    %c0_70 = arith.constant 0 : index
    %111 = vector.load %arg4[%c0_67, %c0_68, %c0_69, %c0_70] : memref<2x1x16x16xi32, #tpu.memory_space<vmem>>, vector<1x1x16x16xi32>
    %112 = vector.shape_cast %111 : vector<1x1x16x16xi32> to vector<16x16xi32>
    %113 = vector.shape_cast %110 : vector<16x16xi32> to vector<1x1x16x16xi32>
    tpu.vector_store %arg4[%c0_67, %c0_68, %c0_69, %c0_70], %113 {strides = array<i32>} : memref<2x1x16x16xi32, #tpu.memory_space<vmem>>, vector<1x1x16x16xi32>,
    %cst_71 = arith.constant 1.500000e+01 : f32
    %114 = vector.broadcast %cst_71 : f32 to vector<16x16xf32>
    %115 = arith.mulf %89, %114 : vector<16x16xf32>
    %116 = arith.fptosi %115 : vector<16x16xf32> to vector<16x16xi32>
    %cst_72 = arith.constant 1.500000e+01 : f32
    %117 = vector.broadcast %cst_72 : f32 to vector<16x16xf32>
    %118 = arith.mulf %91, %117 : vector<16x16xf32>
    %119 = arith.fptosi %118 : vector<16x16xf32> to vector<16x16xi32>
    %c-1640531535_i32_73 = arith.constant -1640531535 : i32
    %120 = vector.broadcast %c-1640531535_i32_73 : i32 to vector<16x16xi32>
    %121 = arith.muli %119, %120 : vector<16x16xi32>
    %122 = arith.xori %116, %121 : vector<16x16xi32>
    %cst_74 = arith.constant 1.500000e+01 : f32
    %123 = vector.broadcast %cst_74 : f32 to vector<16x16xf32>
    %124 = arith.mulf %93, %123 : vector<16x16xf32>
    %125 = arith.fptosi %124 : vector<16x16xf32> to vector<16x16xi32>
    %c805459861_i32_75 = arith.constant 805459861 : i32
    %126 = vector.broadcast %c805459861_i32_75 : i32 to vector<16x16xi32>
    %127 = arith.muli %125, %126 : vector<16x16xi32>
    %128 = arith.xori %122, %127 : vector<16x16xi32>
    %c4095_i32_76 = arith.constant 4095 : i32
    %129 = vector.broadcast %c4095_i32_76 : i32 to vector<16x16xi32>
    %130 = arith.andi %128, %129 : vector<16x16xi32>
    %c1_77 = arith.constant 1 : index
    %c0_78 = arith.constant 0 : index
    %c0_79 = arith.constant 0 : index
    %c0_80 = arith.constant 0 : index
    %131 = vector.load %arg4[%c1_77, %c0_78, %c0_79, %c0_80] : memref<2x1x16x16xi32, #tpu.memory_space<vmem>>, vector<1x1x16x16xi32>
    %132 = vector.shape_cast %131 : vector<1x1x16x16xi32> to vector<16x16xi32>
    %133 = vector.shape_cast %130 : vector<16x16xi32> to vector<1x1x16x16xi32>
    tpu.vector_store %arg4[%c1_77, %c0_78, %c0_79, %c0_80], %133 {strides = array<i32>} : memref<2x1x16x16xi32, #tpu.memory_space<vmem>>, vector<1x1x16x16xi32>,
    return
  }
  func.func @transform_0(%arg0: i32) -> (i32, i32, i32, i32) {
    %c0_i32 = arith.constant 0 : i32
    %c0_i32_0 = arith.constant 0 : i32
    %c0_i32_1 = arith.constant 0 : i32
    %c0_i32_2 = arith.constant 0 : i32
    return %arg0, %c0_i32, %c0_i32_0, %c0_i32_1 : i32, i32, i32, i32
  }
  func.func @transform_1(%arg0: i32) -> (i32, i32, i32, i32) {
    %c0_i32 = arith.constant 0 : i32
    %c0_i32_0 = arith.constant 0 : i32
    %c0_i32_1 = arith.constant 0 : i32
    %c0_i32_2 = arith.constant 0 : i32
    return %c0_i32, %arg0, %c0_i32_0, %c0_i32_1 : i32, i32, i32, i32
  }
  func.func @transform_2(%arg0: i32) -> (i32, i32, i32, i32) {
    %c0_i32 = arith.constant 0 : i32
    %c0_i32_0 = arith.constant 0 : i32
    %c0_i32_1 = arith.constant 0 : i32
    %c0_i32_2 = arith.constant 0 : i32
    return %c0_i32, %arg0, %c0_i32_0, %c0_i32_1 : i32, i32, i32, i32
  }
  func.func @transform_3(%arg0: i32) -> (i32, i32, i32, i32) {
    %c0_i32 = arith.constant 0 : i32
    %c0_i32_0 = arith.constant 0 : i32
    %c0_i32_1 = arith.constant 0 : i32
    %c0_i32_2 = arith.constant 0 : i32
    return %c0_i32, %arg0, %c0_i32_0, %c0_i32_1 : i32, i32, i32, i32
  }
}

module attributes {stable_mosaic.version = 11 : i64} {
  func.func @_fused_upsample_kernel(%arg0: i32, %arg1: i32, %arg2: memref<1x3x1x4x4xf32, #tpu.memory_space<vmem>>, %arg3: memref<16x4xf32, #tpu.memory_space<vmem>>, %arg4: memref<4x16xf32, #tpu.memory_space<vmem>>, %arg5: memref<1x3x1x8x8xf32, #tpu.memory_space<vmem>>, %arg6: memref<16x8xf32, #tpu.memory_space<vmem>>, %arg7: memref<8x16xf32, #tpu.memory_space<vmem>>, %arg8: memref<1x3x1x16x16xf32, #tpu.memory_space<vmem>>, %arg9: memref<1x3x16x16xf32, #tpu.memory_space<vmem>>) attributes {dimension_semantics = [#tpu.dimension_semantics<parallel>, #tpu.dimension_semantics<arbitrary>], iteration_bounds = array<i64: 2, 4>, scalar_prefetch = 0 : i64, scratch_operands = 0 : i64, tpu.core_type = #tpu.core_type<tc>, window_params = [{transform_indices = @transform_0, window_bounds = array<i64: 1, 3, 1, 4, 4>}, {pipeline_mode = #tpu.pipeline_mode<synchronous>, transform_indices = @transform_1, window_bounds = array<i64: 16, 4>}, {pipeline_mode = #tpu.pipeline_mode<synchronous>, transform_indices = @transform_2, window_bounds = array<i64: 4, 16>}, {transform_indices = @transform_3, window_bounds = array<i64: 1, 3, 1, 8, 8>}, {pipeline_mode = #tpu.pipeline_mode<synchronous>, transform_indices = @transform_4, window_bounds = array<i64: 16, 8>}, {pipeline_mode = #tpu.pipeline_mode<synchronous>, transform_indices = @transform_5, window_bounds = array<i64: 8, 16>}, {transform_indices = @transform_6, window_bounds = array<i64: 1, 3, 1, 16, 16>}, {transform_indices = @transform_7, window_bounds = array<i64: 1, 3, 16, 16>}]} {
    %c0_i32 = arith.constant 0 : i32
    %0 = arith.cmpi sge, %arg1, %c0_i32 : i32
    %c1_i32 = arith.constant 1 : i32
    %1 = arith.cmpi slt, %arg1, %c1_i32 : i32
    %2 = arith.andi %0, %1 : i1
    %3 = arith.extui %2 : i1 to i32
    %c0_i32_0 = arith.constant 0 : i32
    %4 = arith.cmpi ne, %3, %c0_i32_0 : i32
    scf.if %4 {
      %c0 = arith.constant 0 : index
      %c0_5 = arith.constant 0 : index
      %c0_6 = arith.constant 0 : index
      %c0_7 = arith.constant 0 : index
      %c0_8 = arith.constant 0 : index
      %15 = vector.load %arg2[%c0, %c0_5, %c0_6, %c0_7, %c0_8] : memref<1x3x1x4x4xf32, #tpu.memory_space<vmem>>, vector<1x3x1x4x4xf32>
      %16 = vector.shape_cast %15 : vector<1x3x1x4x4xf32> to vector<3x4x4xf32>
      %17 = vector.shape_cast %16 : vector<3x4x4xf32> to vector<12x4xf32>
      %c0_9 = arith.constant 0 : index
      %c0_10 = arith.constant 0 : index
      %18 = vector.load %arg4[%c0_9, %c0_10] : memref<4x16xf32, #tpu.memory_space<vmem>>, vector<4x16xf32>
      %cst = arith.constant dense<0.000000e+00> : vector<12x16xf32>
      %19 = tpu.matmul %17, %18, %cst {dimension_numbers = #tpu.dot_dimension_numbers<[1], [0], [0], [1], [0, 0, 1, 1], [], []>} : vector<12x4xf32>, vector<4x16xf32>, vector<12x16xf32> -> vector<12x16xf32>
      %c0_11 = arith.constant 0 : index
      %c0_12 = arith.constant 0 : index
      %20 = vector.load %arg3[%c0_11, %c0_12] : memref<16x4xf32, #tpu.memory_space<vmem>>, vector<16x4xf32>
      %21 = vector.extract_strided_slice %19 {offsets = [0, 0], sizes = [4, 16], strides = [1, 1]} : vector<12x16xf32> to vector<4x16xf32>
      %cst_13 = arith.constant dense<0.000000e+00> : vector<16x16xf32>
      %22 = tpu.matmul %20, %21, %cst_13 {dimension_numbers = #tpu.dot_dimension_numbers<[1], [0], [0], [1], [0, 0, 1, 1], [], []>} : vector<16x4xf32>, vector<4x16xf32>, vector<16x16xf32> -> vector<16x16xf32>
      %c0_14 = arith.constant 0 : index
      %c0_15 = arith.constant 0 : index
      %c0_16 = arith.constant 0 : index
      %c0_17 = arith.constant 0 : index
      %23 = vector.load %arg9[%c0_14, %c0_15, %c0_16, %c0_17] : memref<1x3x16x16xf32, #tpu.memory_space<vmem>>, vector<1x1x16x16xf32>
      %24 = vector.shape_cast %23 : vector<1x1x16x16xf32> to vector<16x16xf32>
      %25 = vector.shape_cast %22 : vector<16x16xf32> to vector<1x1x16x16xf32>
      tpu.vector_store %arg9[%c0_14, %c0_15, %c0_16, %c0_17], %25 {strides = array<i32>} : memref<1x3x16x16xf32, #tpu.memory_space<vmem>>, vector<1x1x16x16xf32>,
      %26 = vector.extract_strided_slice %19 {offsets = [4, 0], sizes = [4, 16], strides = [1, 1]} : vector<12x16xf32> to vector<4x16xf32>
      %cst_18 = arith.constant dense<0.000000e+00> : vector<16x16xf32>
      %27 = tpu.matmul %20, %26, %cst_18 {dimension_numbers = #tpu.dot_dimension_numbers<[1], [0], [0], [1], [0, 0, 1, 1], [], []>} : vector<16x4xf32>, vector<4x16xf32>, vector<16x16xf32> -> vector<16x16xf32>
      %c0_19 = arith.constant 0 : index
      %c1 = arith.constant 1 : index
      %c0_20 = arith.constant 0 : index
      %c0_21 = arith.constant 0 : index
      %28 = vector.load %arg9[%c0_19, %c1, %c0_20, %c0_21] : memref<1x3x16x16xf32, #tpu.memory_space<vmem>>, vector<1x1x16x16xf32>
      %29 = vector.shape_cast %28 : vector<1x1x16x16xf32> to vector<16x16xf32>
      %30 = vector.shape_cast %27 : vector<16x16xf32> to vector<1x1x16x16xf32>
      tpu.vector_store %arg9[%c0_19, %c1, %c0_20, %c0_21], %30 {strides = array<i32>} : memref<1x3x16x16xf32, #tpu.memory_space<vmem>>, vector<1x1x16x16xf32>,
      %31 = vector.extract_strided_slice %19 {offsets = [8, 0], sizes = [4, 16], strides = [1, 1]} : vector<12x16xf32> to vector<4x16xf32>
      %cst_22 = arith.constant dense<0.000000e+00> : vector<16x16xf32>
      %32 = tpu.matmul %20, %31, %cst_22 {dimension_numbers = #tpu.dot_dimension_numbers<[1], [0], [0], [1], [0, 0, 1, 1], [], []>} : vector<16x4xf32>, vector<4x16xf32>, vector<16x16xf32> -> vector<16x16xf32>
      %c0_23 = arith.constant 0 : index
      %c2 = arith.constant 2 : index
      %c0_24 = arith.constant 0 : index
      %c0_25 = arith.constant 0 : index
      %33 = vector.load %arg9[%c0_23, %c2, %c0_24, %c0_25] : memref<1x3x16x16xf32, #tpu.memory_space<vmem>>, vector<1x1x16x16xf32>
      %34 = vector.shape_cast %33 : vector<1x1x16x16xf32> to vector<16x16xf32>
      %35 = vector.shape_cast %32 : vector<16x16xf32> to vector<1x1x16x16xf32>
      tpu.vector_store %arg9[%c0_23, %c2, %c0_24, %c0_25], %35 {strides = array<i32>} : memref<1x3x16x16xf32, #tpu.memory_space<vmem>>, vector<1x1x16x16xf32>,
    } else {
    }
    %c1_i32_1 = arith.constant 1 : i32
    %5 = arith.cmpi sge, %arg1, %c1_i32_1 : i32
    %c2_i32 = arith.constant 2 : i32
    %6 = arith.cmpi slt, %arg1, %c2_i32 : i32
    %7 = arith.andi %5, %6 : i1
    %8 = arith.extui %7 : i1 to i32
    %c0_i32_2 = arith.constant 0 : i32
    %9 = arith.cmpi ne, %8, %c0_i32_2 : i32
    scf.if %9 {
      %c0 = arith.constant 0 : index
      %c0_5 = arith.constant 0 : index
      %c0_6 = arith.constant 0 : index
      %c0_7 = arith.constant 0 : index
      %c0_8 = arith.constant 0 : index
      %15 = vector.load %arg5[%c0, %c0_5, %c0_6, %c0_7, %c0_8] : memref<1x3x1x8x8xf32, #tpu.memory_space<vmem>>, vector<1x3x1x8x8xf32>
      %16 = vector.shape_cast %15 : vector<1x3x1x8x8xf32> to vector<3x8x8xf32>
      %17 = vector.shape_cast %16 : vector<3x8x8xf32> to vector<24x8xf32>
      %c0_9 = arith.constant 0 : index
      %c0_10 = arith.constant 0 : index
      %18 = vector.load %arg7[%c0_9, %c0_10] : memref<8x16xf32, #tpu.memory_space<vmem>>, vector<8x16xf32>
      %cst = arith.constant dense<0.000000e+00> : vector<24x16xf32>
      %19 = tpu.matmul %17, %18, %cst {dimension_numbers = #tpu.dot_dimension_numbers<[1], [0], [0], [1], [0, 0, 1, 1], [], []>} : vector<24x8xf32>, vector<8x16xf32>, vector<24x16xf32> -> vector<24x16xf32>
      %c0_11 = arith.constant 0 : index
      %c0_12 = arith.constant 0 : index
      %20 = vector.load %arg6[%c0_11, %c0_12] : memref<16x8xf32, #tpu.memory_space<vmem>>, vector<16x8xf32>
      %21 = vector.extract_strided_slice %19 {offsets = [0, 0], sizes = [8, 16], strides = [1, 1]} : vector<24x16xf32> to vector<8x16xf32>
      %cst_13 = arith.constant dense<0.000000e+00> : vector<16x16xf32>
      %22 = tpu.matmul %20, %21, %cst_13 {dimension_numbers = #tpu.dot_dimension_numbers<[1], [0], [0], [1], [0, 0, 1, 1], [], []>} : vector<16x8xf32>, vector<8x16xf32>, vector<16x16xf32> -> vector<16x16xf32>
      %c0_14 = arith.constant 0 : index
      %c0_15 = arith.constant 0 : index
      %c0_16 = arith.constant 0 : index
      %c0_17 = arith.constant 0 : index
      %23 = vector.load %arg9[%c0_14, %c0_15, %c0_16, %c0_17] : memref<1x3x16x16xf32, #tpu.memory_space<vmem>>, vector<1x1x16x16xf32>
      %24 = vector.shape_cast %23 : vector<1x1x16x16xf32> to vector<16x16xf32>
      %25 = vector.shape_cast %22 : vector<16x16xf32> to vector<1x1x16x16xf32>
      tpu.vector_store %arg9[%c0_14, %c0_15, %c0_16, %c0_17], %25 {strides = array<i32>} : memref<1x3x16x16xf32, #tpu.memory_space<vmem>>, vector<1x1x16x16xf32>,
      %26 = vector.extract_strided_slice %19 {offsets = [8, 0], sizes = [8, 16], strides = [1, 1]} : vector<24x16xf32> to vector<8x16xf32>
      %cst_18 = arith.constant dense<0.000000e+00> : vector<16x16xf32>
      %27 = tpu.matmul %20, %26, %cst_18 {dimension_numbers = #tpu.dot_dimension_numbers<[1], [0], [0], [1], [0, 0, 1, 1], [], []>} : vector<16x8xf32>, vector<8x16xf32>, vector<16x16xf32> -> vector<16x16xf32>
      %c0_19 = arith.constant 0 : index
      %c1 = arith.constant 1 : index
      %c0_20 = arith.constant 0 : index
      %c0_21 = arith.constant 0 : index
      %28 = vector.load %arg9[%c0_19, %c1, %c0_20, %c0_21] : memref<1x3x16x16xf32, #tpu.memory_space<vmem>>, vector<1x1x16x16xf32>
      %29 = vector.shape_cast %28 : vector<1x1x16x16xf32> to vector<16x16xf32>
      %30 = vector.shape_cast %27 : vector<16x16xf32> to vector<1x1x16x16xf32>
      tpu.vector_store %arg9[%c0_19, %c1, %c0_20, %c0_21], %30 {strides = array<i32>} : memref<1x3x16x16xf32, #tpu.memory_space<vmem>>, vector<1x1x16x16xf32>,
      %31 = vector.extract_strided_slice %19 {offsets = [16, 0], sizes = [8, 16], strides = [1, 1]} : vector<24x16xf32> to vector<8x16xf32>
      %cst_22 = arith.constant dense<0.000000e+00> : vector<16x16xf32>
      %32 = tpu.matmul %20, %31, %cst_22 {dimension_numbers = #tpu.dot_dimension_numbers<[1], [0], [0], [1], [0, 0, 1, 1], [], []>} : vector<16x8xf32>, vector<8x16xf32>, vector<16x16xf32> -> vector<16x16xf32>
      %c0_23 = arith.constant 0 : index
      %c2 = arith.constant 2 : index
      %c0_24 = arith.constant 0 : index
      %c0_25 = arith.constant 0 : index
      %33 = vector.load %arg9[%c0_23, %c2, %c0_24, %c0_25] : memref<1x3x16x16xf32, #tpu.memory_space<vmem>>, vector<1x1x16x16xf32>
      %34 = vector.shape_cast %33 : vector<1x1x16x16xf32> to vector<16x16xf32>
      %35 = vector.shape_cast %32 : vector<16x16xf32> to vector<1x1x16x16xf32>
      tpu.vector_store %arg9[%c0_23, %c2, %c0_24, %c0_25], %35 {strides = array<i32>} : memref<1x3x16x16xf32, #tpu.memory_space<vmem>>, vector<1x1x16x16xf32>,
    } else {
    }
    %c2_i32_3 = arith.constant 2 : i32
    %10 = arith.cmpi sge, %arg1, %c2_i32_3 : i32
    %c4_i32 = arith.constant 4 : i32
    %11 = arith.cmpi slt, %arg1, %c4_i32 : i32
    %12 = arith.andi %10, %11 : i1
    %13 = arith.extui %12 : i1 to i32
    %c0_i32_4 = arith.constant 0 : i32
    %14 = arith.cmpi ne, %13, %c0_i32_4 : i32
    scf.if %14 {
      %c0 = arith.constant 0 : index
      %c0_5 = arith.constant 0 : index
      %c0_6 = arith.constant 0 : index
      %c0_7 = arith.constant 0 : index
      %c0_8 = arith.constant 0 : index
      %15 = vector.load %arg8[%c0, %c0_5, %c0_6, %c0_7, %c0_8] : memref<1x3x1x16x16xf32, #tpu.memory_space<vmem>>, vector<1x3x1x16x16xf32>
      %16 = vector.shape_cast %15 : vector<1x3x1x16x16xf32> to vector<3x16x16xf32>
      %c0_9 = arith.constant 0 : index
      %c0_10 = arith.constant 0 : index
      %c0_11 = arith.constant 0 : index
      %c0_12 = arith.constant 0 : index
      %17 = vector.load %arg9[%c0_9, %c0_10, %c0_11, %c0_12] : memref<1x3x16x16xf32, #tpu.memory_space<vmem>>, vector<1x3x16x16xf32>
      %18 = vector.shape_cast %17 : vector<1x3x16x16xf32> to vector<3x16x16xf32>
      %19 = vector.shape_cast %16 : vector<3x16x16xf32> to vector<1x3x16x16xf32>
      tpu.vector_store %arg9[%c0_9, %c0_10, %c0_11, %c0_12], %19 {strides = array<i32>} : memref<1x3x16x16xf32, #tpu.memory_space<vmem>>, vector<1x3x16x16xf32>,
    } else {
    }
    return
  }
  func.func @transform_0(%arg0: i32, %arg1: i32) -> (i32, i32, i32, i32, i32) {
    %c0_i32 = arith.constant 0 : i32
    %0 = arith.subi %arg1, %c0_i32 : i32
    %c0_i32_0 = arith.constant 0 : i32
    %c0_i32_1 = arith.constant 0 : i32
    %1 = arith.maxsi %c0_i32_0, %0 : i32
    %2 = arith.minsi %c0_i32_1, %1 : i32
    %c0_i32_2 = arith.constant 0 : i32
    %c0_i32_3 = arith.constant 0 : i32
    %c0_i32_4 = arith.constant 0 : i32
    %c0_i32_5 = arith.constant 0 : i32
    return %2, %c0_i32_2, %arg0, %c0_i32_3, %c0_i32_4 : i32, i32, i32, i32, i32
  }
  func.func @transform_1(%arg0: i32, %arg1: i32) -> (i32, i32) {
    %c0_i32 = arith.constant 0 : i32
    %c0_i32_0 = arith.constant 0 : i32
    %c0_i32_1 = arith.constant 0 : i32
    return %c0_i32, %c0_i32_0 : i32, i32
  }
  func.func @transform_2(%arg0: i32, %arg1: i32) -> (i32, i32) {
    %c0_i32 = arith.constant 0 : i32
    %c0_i32_0 = arith.constant 0 : i32
    %c0_i32_1 = arith.constant 0 : i32
    return %c0_i32, %c0_i32_0 : i32, i32
  }
  func.func @transform_3(%arg0: i32, %arg1: i32) -> (i32, i32, i32, i32, i32) {
    %c1_i32 = arith.constant 1 : i32
    %0 = arith.subi %arg1, %c1_i32 : i32
    %c0_i32 = arith.constant 0 : i32
    %c0_i32_0 = arith.constant 0 : i32
    %1 = arith.maxsi %c0_i32, %0 : i32
    %2 = arith.minsi %c0_i32_0, %1 : i32
    %c0_i32_1 = arith.constant 0 : i32
    %c0_i32_2 = arith.constant 0 : i32
    %c0_i32_3 = arith.constant 0 : i32
    %c0_i32_4 = arith.constant 0 : i32
    return %2, %c0_i32_1, %arg0, %c0_i32_2, %c0_i32_3 : i32, i32, i32, i32, i32
  }
  func.func @transform_4(%arg0: i32, %arg1: i32) -> (i32, i32) {
    %c0_i32 = arith.constant 0 : i32
    %c0_i32_0 = arith.constant 0 : i32
    %c0_i32_1 = arith.constant 0 : i32
    return %c0_i32, %c0_i32_0 : i32, i32
  }
  func.func @transform_5(%arg0: i32, %arg1: i32) -> (i32, i32) {
    %c0_i32 = arith.constant 0 : i32
    %c0_i32_0 = arith.constant 0 : i32
    %c0_i32_1 = arith.constant 0 : i32
    return %c0_i32, %c0_i32_0 : i32, i32
  }
  func.func @transform_6(%arg0: i32, %arg1: i32) -> (i32, i32, i32, i32, i32) {
    %c2_i32 = arith.constant 2 : i32
    %0 = arith.subi %arg1, %c2_i32 : i32
    %c0_i32 = arith.constant 0 : i32
    %c1_i32 = arith.constant 1 : i32
    %1 = arith.maxsi %c0_i32, %0 : i32
    %2 = arith.minsi %c1_i32, %1 : i32
    %c0_i32_0 = arith.constant 0 : i32
    %c0_i32_1 = arith.constant 0 : i32
    %c0_i32_2 = arith.constant 0 : i32
    %c0_i32_3 = arith.constant 0 : i32
    return %2, %c0_i32_0, %arg0, %c0_i32_1, %c0_i32_2 : i32, i32, i32, i32, i32
  }
  func.func @transform_7(%arg0: i32, %arg1: i32) -> (i32, i32, i32, i32) {
    %c0_i32 = arith.constant 0 : i32
    %c0_i32_0 = arith.constant 0 : i32
    %c0_i32_1 = arith.constant 0 : i32
    return %arg0, %arg1, %c0_i32, %c0_i32_0 : i32, i32, i32, i32
  }
}

</mosaic_0001>

<llo_original>
// kernel: multires_hash_encoding.2
$region0: #{multires_hash_encoding.2}
  #allocation0 [shape = 'u32[]', space=smem, size = 0x4, offset = 0x4, fixed_abs, tag = 'smem constant byte address 0x4 - core index']
  #allocation1 [shape = 'u32[72,128]{1,0:T(1,128)}', space=vmem, size = 0x9000, scoped, tag = 'internal scratch']
  %s0 = inlined_call_operand.vmem [shape: f32[2,3,16,16], index: 0, kind: input, shape index: {}]
  %s1 = inlined_call_operand.vmem [shape: s32[1,2,4,4], index: 1, kind: output, shape index: {0}]
  %s2 = inlined_call_operand.vmem [shape: s32[1,2,8,8], index: 2, kind: output, shape index: {1}]
  %s3 = inlined_call_operand.vmem [shape: s32[2,2,16,16], index: 3, kind: output, shape index: {2}]
  %4 = xla_tuple %s1, %s2, %s3
  %s5 = sld [smem:[#allocation0]]
  $region87: #{multires_hash_encoding.2} parent=0
    _
  %s7 = ssub.s32 1, %s5
  %s8 = scalar_select 0, %s7, %s5
  $region1: #{multires_hash_encoding.2} parent=0
    #allocation2 [shape = 'u8[32768]{0}', space=vmem, size = 0x8000, scoped, tag = 'output window, operand 2']
    loop: start=0, step=1, limit=4
    $region2: #{multires_hash_encoding.2} parent=1 // loop_pre_header
      _
    $region3: #{multires_hash_encoding.2} parent=1 // loop_header
      %s10 = sphi 0, %s14
      %p11 = scmp.ge.s32.totalorder %s10, 4
      %s20 = sphi 0, %s22
      %s23 = sphi 0, %s20
      %s24 = sphi 0, %s23
      %s40 = sphi 0, %s24
      %s46 = sphi 0, %s48
      %s49 = sphi 0, %s46
      %s50 = sphi 0, %s49
      %s66 = sphi 0, %s50
      %s72 = sphi 0, %s74
      %s75 = sphi 0, %s72
      %s76 = sphi 0, %s75
      %s92 = sphi 0, %s76
      %s98 = sphi 0, %s100
      %s101 = sphi 0, %s98
      %s102 = sphi 0, %s101
      %s118 = sphi 0, %s102
    $region4: #{multires_hash_encoding.2} parent=1 // loop_header_branch
      %13 = sbr.rel (%p11) target = $region8
    $region5: #{multires_hash_encoding.2} parent=1 // loop_body
      %s15 = ssub.s32 %s10, 1
      %s16 = ssub.s32 %s10, 2
      %s17 = sadd.s32 %s10, 1
      %s18 = ssub.s32 %s10, %s17
      %p19 = scmp.eq.s32.totalorder %s18, 0
      %s21 = sadd.s32 %s20, 1
      %s22 = scalar_select %p19, %s20, %s21
      %p25 = pneg %p19
      %p26 = scmp.eq.s32.totalorder %s10, 1
      %p27 = por %p25, %p26
      %p28 = scmp.ne.s32.totalorder %s20, %s23
      %p29 = scmp.eq.s32.totalorder %s10, 0
      %p30 = por %p28, %p29
      %p31 = scmp.ne.s32.totalorder %s20, %s23
      %p32 = scmp.eq.s32.totalorder %s15, 1
      %p33 = por %p31, %p32
      %p34 = scmp.ne.s32.totalorder %s23, %s24
      %p35 = scmp.eq.s32.totalorder %s15, 0
      %p36 = por %p34, %p35
      %p37 = scmp.ne.s32.totalorder %s23, %s24
      %p38 = scmp.eq.s32.totalorder %s16, 1
      %p39 = por %p37, %p38
      %p41 = scmp.ne.s32.totalorder %s24, %s40
      %p42 = scmp.eq.s32.totalorder %s16, 0
      %p43 = por %p41, %p42
      %s44 = ssub.s32 %s10, %s17
      %p45 = scmp.eq.s32.totalorder %s44, 0
      %s47 = sadd.s32 %s46, 1
      %s48 = scalar_select %p45, %s46, %s47
      %p51 = pneg %p45
      %p52 = scmp.eq.s32.totalorder %s10, 1
      %p53 = por %p51, %p52
      %p54 = scmp.ne.s32.totalorder %s46, %s49
      %p55 = scmp.eq.s32.totalorder %s10, 0
      %p56 = por %p54, %p55
      %p57 = scmp.ne.s32.totalorder %s46, %s49
      %p58 = scmp.eq.s32.totalorder %s15, 1
      %p59 = por %p57, %p58
      %p60 = scmp.ne.s32.totalorder %s49, %s50
      %p61 = scmp.eq.s32.totalorder %s15, 0
      %p62 = por %p60, %p61
      %p63 = scmp.ne.s32.totalorder %s49, %s50
      %p64 = scmp.eq.s32.totalorder %s16, 1
      %p65 = por %p63, %p64
      %p67 = scmp.ne.s32.totalorder %s50, %s66
      %p68 = scmp.eq.s32.totalorder %s16, 0
      %p69 = por %p67, %p68
      %s70 = ssub.s32 %s10, %s17
      %p71 = scmp.eq.s32.totalorder %s70, 0
      %s73 = sadd.s32 %s72, 1
      %s74 = scalar_select %p71, %s72, %s73
      %p77 = pneg %p71
      %p78 = scmp.eq.s32.totalorder %s10, 1
      %p79 = por %p77, %p78
      %p80 = scmp.ne.s32.totalorder %s72, %s75
      %p81 = scmp.eq.s32.totalorder %s10, 0
      %p82 = por %p80, %p81
      %p83 = scmp.ne.s32.totalorder %s72, %s75
      %p84 = scmp.eq.s32.totalorder %s15, 1
      %p85 = por %p83, %p84
      %p86 = scmp.ne.s32.totalorder %s75, %s76
      %p87 = scmp.eq.s32.totalorder %s15, 0
      %p88 = por %p86, %p87
      %p89 = scmp.ne.s32.totalorder %s75, %s76
      %p90 = scmp.eq.s32.totalorder %s16, 1
      %p91 = por %p89, %p90
      %p93 = scmp.ne.s32.totalorder %s76, %s92
      %p94 = scmp.eq.s32.totalorder %s16, 0
      %p95 = por %p93, %p94
      %s96 = ssub.s32 %s10, %s17
      %p97 = scmp.eq.s32.totalorder %s96, 0
      %s99 = sadd.s32 %s98, 1
      %s100 = scalar_select %p97, %s98, %s99
      %p103 = pneg %p97
      %p104 = scmp.eq.s32.totalorder %s10, 1
      %p105 = por %p103, %p104
      %p106 = scmp.ne.s32.totalorder %s98, %s101
      %p107 = scmp.eq.s32.totalorder %s10, 0
      %p108 = por %p106, %p107
      %p109 = scmp.ne.s32.totalorder %s98, %s101
      %p110 = scmp.eq.s32.totalorder %s15, 1
      %p111 = por %p109, %p110
      %p112 = scmp.ne.s32.totalorder %s101, %s102
      %p113 = scmp.eq.s32.totalorder %s15, 0
      %p114 = por %p112, %p113
      %p115 = scmp.ne.s32.totalorder %s101, %s102
      %p116 = scmp.eq.s32.totalorder %s16, 1
      %p117 = por %p115, %p116
      %p119 = scmp.ne.s32.totalorder %s102, %s118
      %p120 = scmp.eq.s32.totalorder %s16, 0
      %p121 = por %p119, %p120
      %p122 = scmp.le.s32.totalorder 1, %s10
      %p123 = scmp.lt.s32.totalorder %s10, 3
      %p124 = pnand %p122, %p123
      %p125 = pneg %p124
      // Predicated region
      $region9: #{multires_hash_encoding.2} parent=5 // pred_check
        _
      $region10: #{multires_hash_encoding.2} parent=5 // pred_check_branch
        %127 = sbr.rel (%p124) target = $region12
      $region11: #{multires_hash_encoding.2} parent=5 // pred_region
        %s128 = ssub.s32 %s10, 1
      $region12: #{multires_hash_encoding.2} parent=5 // pred_fallthru
        _
      %p129 = scmp.lt.s32.totalorder %s10, 2
      // Predicated region
      $region13: #{multires_hash_encoding.2} parent=5 // pred_check
        %p130 = pneg %p129
      $region14: #{multires_hash_encoding.2} parent=5 // pred_check_branch
        %132 = sbr.rel (%p130) target = $region16
      $region15: #{multires_hash_encoding.2} parent=5 // pred_region
        // Predicated region
        $region17: #{multires_hash_encoding.2} parent=15 // pred_check
          %p133 = pneg %p30
        $region18: #{multires_hash_encoding.2} parent=15 // pred_check_branch
          %135 = sbr.rel (%p133) target = $region20
        $region19: #{multires_hash_encoding.2} parent=15 // pred_region
          %p136 = scmp.lt.s32.totalorder %s10, 1
          %s137 = scalar_select %p136, %s10, 1
          %s138 = smul.addr %s137, 6
          %s139 = smul.addr %s138, 8
          %s140 = scalar_lea.vmem %s0, %s139
        $region20: #{multires_hash_encoding.2} parent=15 // pred_fallthru
          _
      $region16: #{multires_hash_encoding.2} parent=5 // pred_fallthru
        _
      %p141 = scmp.le.s32.totalorder 1, %s10
      %p142 = scmp.lt.s32.totalorder %s10, 3
      %p143 = pnand %p141, %p142
      %p144 = pneg %p143
      // Predicated region
      $region21: #{multires_hash_encoding.2} parent=5 // pred_check
        _
      $region22: #{multires_hash_encoding.2} parent=5 // pred_check_branch
        %146 = sbr.rel (%p143) target = $region24
      $region23: #{multires_hash_encoding.2} parent=5 // pred_region
        %s147 = ssub.s32 %s10, 1
        %p148 = scmp.lt.s32.totalorder %s15, 1
        %s149 = scalar_select %p148, %s15, 1
        %s150 = smul.addr %s149, 6
        %s151 = smul.addr %s150, 8
        %s152 = scalar_lea.vmem %s0, %s151
        %p153 = pneg %p36
        %p154 = pneg %p33
        %p155 = pneg %p62
        %p156 = pneg %p59
        %p157 = scmp.lt.s32.totalorder %s15, 1
        %s158 = scalar_select %p157, %s15, 1
        %s159 = smul.addr %s158, 4
        %s160 = scalar_lea.vmem %s1, %s159
        %p161 = pneg %p88
        %p162 = pneg %p85
        %p163 = scmp.lt.s32.totalorder %s15, 1
        %s164 = scalar_select %p163, %s15, 1
        %s165 = smul.addr %s164, 8
        %s166 = scalar_lea.vmem %s2, %s165
        %p167 = pneg %p114
        %p168 = pneg %p111
        %s169 = sand.u32 %s101, 1
        %s170 = sand.u32 %s101, 1
        %s171 = smul.addr %s170, 32
        %s172 = scalar_lea.vmem [#allocation2], %s171
        %p173 = scmp.lt.s32.totalorder %s15, 1
        %s174 = scalar_select %p173, %s15, 1
        %s175 = smul.addr %s174, 6
        %s176 = smul.addr %s175, 8
        %s177 = scalar_lea.vmem %s0, %s176
        %p178 = scmp.lt.s32.totalorder %s15, 1
        %s179 = scalar_select %p178, %s15, 1
        %s180 = smul.addr %s179, 4
        %s181 = scalar_lea.vmem %s1, %s180
        %p182 = scmp.lt.s32.totalorder %s15, 1
        %s183 = scalar_select %p182, %s15, 1
        %s184 = smul.addr %s183, 8
        %s185 = scalar_lea.vmem %s2, %s184
        %v186 = vld [vmem:[%s177] sm:$0xff]
        %v187 = vld [vmem:[%s177 + $0x8] sm:$0xff]
        %v190 = vrot.slane %v186, 4
        %v191 = vrot.slane %v187, 4
        %vm194 = vcmask 125952
        %v195 = vsel %vm194, %v186, -inf
        %v196 = vrot.slane %v195, 4
        %v197 = vmax.f32 %v195, %v196
        %v198 = vrot.slane %v197, 2
        %v199 = vmax.f32 %v197, %v198
        %v200 = vrot.slane %v199, 1
        %v201 = vmax.f32 %v199, %v200
        %v202 = vsel %vm194, %v190, -inf
        %v203 = vrot.slane %v202, 4
        %v204 = vmax.f32 %v202, %v203
        %v205 = vrot.slane %v204, 2
        %v206 = vmax.f32 %v204, %v205
        %v207 = vrot.slane %v206, 1
        %v208 = vmax.f32 %v206, %v207
        %v209 = vsel %vm194, %v187, -inf
        %v210 = vrot.slane %v209, 4
        %v211 = vmax.f32 %v209, %v210
        %v212 = vrot.slane %v211, 2
        %v213 = vmax.f32 %v211, %v212
        %v214 = vrot.slane %v213, 1
        %v215 = vmax.f32 %v213, %v214
        %v216 = vsel %vm194, %v191, -inf
        %v217 = vrot.slane %v216, 4
        %v218 = vmax.f32 %v216, %v217
        %v219 = vrot.slane %v218, 2
        %v220 = vmax.f32 %v218, %v219
        %v221 = vrot.slane %v220, 1
        %v222 = vmax.f32 %v220, %v221
        %vm227 = vcmask 1041409
        %v228 = vsel %vm227, %v208, %v201
        %vm229 = vcmask 1042434
        %v230 = vsel %vm229, %v215, %v228
        %vm231 = vcmask 1043459
        %v232 = vsel %vm231, %v222, %v230
        %234 = vxpose.xlu0.b32.start [1/16] %v232, 128
        %235 = vxpose.xlu0.b32.cont [2/16] 0.0, 128
        %236 = vxpose.xlu0.b32.cont [3/16] 0.0, 128
        %237 = vxpose.xlu0.b32.cont [4/16] 0.0, 128
        %238 = vxpose.xlu0.b32.cont [5/16] 0.0, 128
        %239 = vxpose.xlu0.b32.cont [6/16] 0.0, 128
        %240 = vxpose.xlu0.b32.cont [7/16] 0.0, 128
        %241 = vxpose.xlu0.b32.cont [8/16] 0.0, 128
        %242 = vxpose.xlu0.b32.cont [9/16] 0.0, 128
        %243 = vxpose.xlu0.b32.cont [10/16] 0.0, 128
        %244 = vxpose.xlu0.b32.cont [11/16] 0.0, 128
        %245 = vxpose.xlu0.b32.cont [12/16] 0.0, 128
        %246 = vxpose.xlu0.b32.cont [13/16] 0.0, 128
        %247 = vxpose.xlu0.b32.cont [14/16] 0.0, 128
        %248 = vxpose.xlu0.b32.cont [15/16] 0.0, 128
        %249 = vxpose.xlu0.b32.end [16/16] 0.0, 128
        %v250 = vpop.trf.xlu0
        %v251 = vpop.trf.xlu0
        %v252 = vpop.trf.xlu0
        %v253 = vpop.trf.xlu0
        %v254 = vpop.trf.xlu0
        %v255 = vpop.trf.xlu0
        %v256 = vpop.trf.xlu0
        %v257 = vpop.trf.xlu0
        %v258 = vpop.trf.xlu0
        %v259 = vpop.trf.xlu0
        %v260 = vpop.trf.xlu0
        %v261 = vpop.trf.xlu0
        %v262 = vpop.trf.xlu0
        %v263 = vpop.trf.xlu0
        %v264 = vpop.trf.xlu0
        %v265 = vpop.trf.xlu0
        %v268 = vrot.slane %v250, 4
        %v269 = vrot.slane %v251, 4
        %vm272 = vcmask 27648
        %v273 = vsel %vm272, %v250, -inf
        %v274 = vrot.slane %v273, 4
        %v275 = vmax.f32 %v273, %v274
        %v276 = vrot.slane %v275, 2
        %v277 = vmax.f32 %v275, %v276
        %v278 = vrot.slane %v277, 1
        %v279 = vmax.f32 %v277, %v278
        %v280 = vsel %vm272, %v268, -inf
        %v281 = vrot.slane %v280, 4
        %v282 = vmax.f32 %v280, %v281
        %v283 = vrot.slane %v282, 2
        %v284 = vmax.f32 %v282, %v283
        %v285 = vrot.slane %v284, 1
        %v286 = vmax.f32 %v284, %v285
        %v287 = vsel %vm272, %v251, -inf
        %v288 = vrot.slane %v287, 4
        %v289 = vmax.f32 %v287, %v288
        %v290 = vrot.slane %v289, 2
        %v291 = vmax.f32 %v289, %v290
        %v292 = vrot.slane %v291, 1
        %v293 = vmax.f32 %v291, %v292
        %v294 = vsel %vm272, %v269, -inf
        %v295 = vrot.slane %v294, 4
        %v296 = vmax.f32 %v294, %v295
        %v297 = vrot.slane %v296, 2
        %v298 = vmax.f32 %v296, %v297
        %v299 = vrot.slane %v298, 1
        %v300 = vmax.f32 %v298, %v299
        %v305 = vsel %vm227, %v286, %v279
        %v306 = vsel %vm229, %v293, %v305
        %v307 = vsel %vm231, %v300, %v306
        %309 = vxpose.xlu0.b32.start [1/16] %v307, 128
        %310 = vxpose.xlu0.b32.cont [2/16] 0.0, 128
        %311 = vxpose.xlu0.b32.cont [3/16] 0.0, 128
        %312 = vxpose.xlu0.b32.cont [4/16] 0.0, 128
        %313 = vxpose.xlu0.b32.cont [5/16] 0.0, 128
        %314 = vxpose.xlu0.b32.cont [6/16] 0.0, 128
        %315 = vxpose.xlu0.b32.cont [7/16] 0.0, 128
        %316 = vxpose.xlu0.b32.cont [8/16] 0.0, 128
        %317 = vxpose.xlu0.b32.cont [9/16] 0.0, 128
        %318 = vxpose.xlu0.b32.cont [10/16] 0.0, 128
        %319 = vxpose.xlu0.b32.cont [11/16] 0.0, 128
        %320 = vxpose.xlu0.b32.cont [12/16] 0.0, 128
        %321 = vxpose.xlu0.b32.cont [13/16] 0.0, 128
        %322 = vxpose.xlu0.b32.cont [14/16] 0.0, 128
        %323 = vxpose.xlu0.b32.cont [15/16] 0.0, 128
        %324 = vxpose.xlu0.b32.end [16/16] 0.0, 128
        %v325 = vpop.trf.xlu0
        %v326 = vpop.trf.xlu0
        %v327 = vpop.trf.xlu0
        %v328 = vpop.trf.xlu0
        %v329 = vpop.trf.xlu0
        %v330 = vpop.trf.xlu0
        %v331 = vpop.trf.xlu0
        %v332 = vpop.trf.xlu0
        %v333 = vpop.trf.xlu0
        %v334 = vpop.trf.xlu0
        %v335 = vpop.trf.xlu0
        %v336 = vpop.trf.xlu0
        %v337 = vpop.trf.xlu0
        %v338 = vpop.trf.xlu0
        %v339 = vpop.trf.xlu0
        %v340 = vpop.trf.xlu0
        %s341 = scalar_lea.vmem %s177, 16
        %v342 = vld [vmem:[%s341] sm:$0xff]
        %v343 = vld [vmem:[%s341 + $0x8] sm:$0xff]
        %v346 = vrot.slane %v342, 4
        %v347 = vrot.slane %v343, 4
        %v350 = vsel %vm194, %v342, -inf
        %v351 = vrot.slane %v350, 4
        %v352 = vmax.f32 %v350, %v351
        %v353 = vrot.slane %v352, 2
        %v354 = vmax.f32 %v352, %v353
        %v355 = vrot.slane %v354, 1
        %v356 = vmax.f32 %v354, %v355
        %v357 = vsel %vm194, %v346, -inf
        %v358 = vrot.slane %v357, 4
        %v359 = vmax.f32 %v357, %v358
        %v360 = vrot.slane %v359, 2
        %v361 = vmax.f32 %v359, %v360
        %v362 = vrot.slane %v361, 1
        %v363 = vmax.f32 %v361, %v362
        %v364 = vsel %vm194, %v343, -inf
        %v365 = vrot.slane %v364, 4
        %v366 = vmax.f32 %v364, %v365
        %v367 = vrot.slane %v366, 2
        %v368 = vmax.f32 %v366, %v367
        %v369 = vrot.slane %v368, 1
        %v370 = vmax.f32 %v368, %v369
        %v371 = vsel %vm194, %v347, -inf
        %v372 = vrot.slane %v371, 4
        %v373 = vmax.f32 %v371, %v372
        %v374 = vrot.slane %v373, 2
        %v375 = vmax.f32 %v373, %v374
        %v376 = vrot.slane %v375, 1
        %v377 = vmax.f32 %v375, %v376
        %v382 = vsel %vm227, %v363, %v356
        %v383 = vsel %vm229, %v370, %v382
        %v384 = vsel %vm231, %v377, %v383
        %386 = vxpose.xlu0.b32.start [1/16] %v384, 128
        %387 = vxpose.xlu0.b32.cont [2/16] 0.0, 128
        %388 = vxpose.xlu0.b32.cont [3/16] 0.0, 128
        %389 = vxpose.xlu0.b32.cont [4/16] 0.0, 128
        %390 = vxpose.xlu0.b32.cont [5/16] 0.0, 128
        %391 = vxpose.xlu0.b32.cont [6/16] 0.0, 128
        %392 = vxpose.xlu0.b32.cont [7/16] 0.0, 128
        %393 = vxpose.xlu0.b32.cont [8/16] 0.0, 128
        %394 = vxpose.xlu0.b32.cont [9/16] 0.0, 128
        %395 = vxpose.xlu0.b32.cont [10/16] 0.0, 128
        %396 = vxpose.xlu0.b32.cont [11/16] 0.0, 128
        %397 = vxpose.xlu0.b32.cont [12/16] 0.0, 128
        %398 = vxpose.xlu0.b32.cont [13/16] 0.0, 128
        %399 = vxpose.xlu0.b32.cont [14/16] 0.0, 128
        %400 = vxpose.xlu0.b32.cont [15/16] 0.0, 128
        %401 = vxpose.xlu0.b32.end [16/16] 0.0, 128
        %v402 = vpop.trf.xlu0
        %v403 = vpop.trf.xlu0
        %v404 = vpop.trf.xlu0
        %v405 = vpop.trf.xlu0
        %v406 = vpop.trf.xlu0
        %v407 = vpop.trf.xlu0
        %v408 = vpop.trf.xlu0
        %v409 = vpop.trf.xlu0
        %v410 = vpop.trf.xlu0
        %v411 = vpop.trf.xlu0
        %v412 = vpop.trf.xlu0
        %v413 = vpop.trf.xlu0
        %v414 = vpop.trf.xlu0
        %v415 = vpop.trf.xlu0
        %v416 = vpop.trf.xlu0
        %v417 = vpop.trf.xlu0
        %v420 = vrot.slane %v402, 4
        %v421 = vrot.slane %v403, 4
        %v424 = vsel %vm272, %v402, -inf
        %v425 = vrot.slane %v424, 4
        %v426 = vmax.f32 %v424, %v425
        %v427 = vrot.slane %v426, 2
        %v428 = vmax.f32 %v426, %v427
        %v429 = vrot.slane %v428, 1
        %v430 = vmax.f32 %v428, %v429
        %v431 = vsel %vm272, %v420, -inf
        %v432 = vrot.slane %v431, 4
        %v433 = vmax.f32 %v431, %v432
        %v434 = vrot.slane %v433, 2
        %v435 = vmax.f32 %v433, %v434
        %v436 = vrot.slane %v435, 1
        %v437 = vmax.f32 %v435, %v436
        %v438 = vsel %vm272, %v403, -inf
        %v439 = vrot.slane %v438, 4
        %v440 = vmax.f32 %v438, %v439
        %v441 = vrot.slane %v440, 2
        %v442 = vmax.f32 %v440, %v441
        %v443 = vrot.slane %v442, 1
        %v444 = vmax.f32 %v442, %v443
        %v445 = vsel %vm272, %v421, -inf
        %v446 = vrot.slane %v445, 4
        %v447 = vmax.f32 %v445, %v446
        %v448 = vrot.slane %v447, 2
        %v449 = vmax.f32 %v447, %v448
        %v450 = vrot.slane %v449, 1
        %v451 = vmax.f32 %v449, %v450
        %v456 = vsel %vm227, %v437, %v430
        %v457 = vsel %vm229, %v444, %v456
        %v458 = vsel %vm231, %v451, %v457
        %460 = vxpose.xlu0.b32.start [1/16] %v458, 128
        %461 = vxpose.xlu0.b32.cont [2/16] 0.0, 128
        %462 = vxpose.xlu0.b32.cont [3/16] 0.0, 128
        %463 = vxpose.xlu0.b32.cont [4/16] 0.0, 128
        %464 = vxpose.xlu0.b32.cont [5/16] 0.0, 128
        %465 = vxpose.xlu0.b32.cont [6/16] 0.0, 128
        %466 = vxpose.xlu0.b32.cont [7/16] 0.0, 128
        %467 = vxpose.xlu0.b32.cont [8/16] 0.0, 128
        %468 = vxpose.xlu0.b32.cont [9/16] 0.0, 128
        %469 = vxpose.xlu0.b32.cont [10/16] 0.0, 128
        %470 = vxpose.xlu0.b32.cont [11/16] 0.0, 128
        %471 = vxpose.xlu0.b32.cont [12/16] 0.0, 128
        %472 = vxpose.xlu0.b32.cont [13/16] 0.0, 128
        %473 = vxpose.xlu0.b32.cont [14/16] 0.0, 128
        %474 = vxpose.xlu0.b32.cont [15/16] 0.0, 128
        %475 = vxpose.xlu0.b32.end [16/16] 0.0, 128
        %v476 = vpop.trf.xlu0
        %v477 = vpop.trf.xlu0
        %v478 = vpop.trf.xlu0
        %v479 = vpop.trf.xlu0
        %v480 = vpop.trf.xlu0
        %v481 = vpop.trf.xlu0
        %v482 = vpop.trf.xlu0
        %v483 = vpop.trf.xlu0
        %v484 = vpop.trf.xlu0
        %v485 = vpop.trf.xlu0
        %v486 = vpop.trf.xlu0
        %v487 = vpop.trf.xlu0
        %v488 = vpop.trf.xlu0
        %v489 = vpop.trf.xlu0
        %v490 = vpop.trf.xlu0
        %v491 = vpop.trf.xlu0
        %s492 = scalar_lea.vmem %s177, 32
        %v493 = vld [vmem:[%s492] sm:$0xff]
        %v494 = vld [vmem:[%s492 + $0x8] sm:$0xff]
        %v497 = vrot.slane %v493, 4
        %v498 = vrot.slane %v494, 4
        %v501 = vsel %vm194, %v493, -inf
        %v502 = vrot.slane %v501, 4
        %v503 = vmax.f32 %v501, %v502
        %v504 = vrot.slane %v503, 2
        %v505 = vmax.f32 %v503, %v504
        %v506 = vrot.slane %v505, 1
        %v507 = vmax.f32 %v505, %v506
        %v508 = vsel %vm194, %v497, -inf
        %v509 = vrot.slane %v508, 4
        %v510 = vmax.f32 %v508, %v509
        %v511 = vrot.slane %v510, 2
        %v512 = vmax.f32 %v510, %v511
        %v513 = vrot.slane %v512, 1
        %v514 = vmax.f32 %v512, %v513
        %v515 = vsel %vm194, %v494, -inf
        %v516 = vrot.slane %v515, 4
        %v517 = vmax.f32 %v515, %v516
        %v518 = vrot.slane %v517, 2
        %v519 = vmax.f32 %v517, %v518
        %v520 = vrot.slane %v519, 1
        %v521 = vmax.f32 %v519, %v520
        %v522 = vsel %vm194, %v498, -inf
        %v523 = vrot.slane %v522, 4
        %v524 = vmax.f32 %v522, %v523
        %v525 = vrot.slane %v524, 2
        %v526 = vmax.f32 %v524, %v525
        %v527 = vrot.slane %v526, 1
        %v528 = vmax.f32 %v526, %v527
        %v533 = vsel %vm227, %v514, %v507
        %v534 = vsel %vm229, %v521, %v533
        %v535 = vsel %vm231, %v528, %v534
        %537 = vxpose.xlu0.b32.start [1/16] %v535, 128
        %538 = vxpose.xlu0.b32.cont [2/16] 0.0, 128
        %539 = vxpose.xlu0.b32.cont [3/16] 0.0, 128
        %540 = vxpose.xlu0.b32.cont [4/16] 0.0, 128
        %541 = vxpose.xlu0.b32.cont [5/16] 0.0, 128
        %542 = vxpose.xlu0.b32.cont [6/16] 0.0, 128
        %543 = vxpose.xlu0.b32.cont [7/16] 0.0, 128
        %544 = vxpose.xlu0.b32.cont [8/16] 0.0, 128
        %545 = vxpose.xlu0.b32.cont [9/16] 0.0, 128
        %546 = vxpose.xlu0.b32.cont [10/16] 0.0, 128
        %547 = vxpose.xlu0.b32.cont [11/16] 0.0, 128
        %548 = vxpose.xlu0.b32.cont [12/16] 0.0, 128
        %549 = vxpose.xlu0.b32.cont [13/16] 0.0, 128
        %550 = vxpose.xlu0.b32.cont [14/16] 0.0, 128
        %551 = vxpose.xlu0.b32.cont [15/16] 0.0, 128
        %552 = vxpose.xlu0.b32.end [16/16] 0.0, 128
        %v553 = vpop.trf.xlu0
        %v554 = vpop.trf.xlu0
        %v555 = vpop.trf.xlu0
        %v556 = vpop.trf.xlu0
        %v557 = vpop.trf.xlu0
        %v558 = vpop.trf.xlu0
        %v559 = vpop.trf.xlu0
        %v560 = vpop.trf.xlu0
        %v561 = vpop.trf.xlu0
        %v562 = vpop.trf.xlu0
        %v563 = vpop.trf.xlu0
        %v564 = vpop.trf.xlu0
        %v565 = vpop.trf.xlu0
        %v566 = vpop.trf.xlu0
        %v567 = vpop.trf.xlu0
        %v568 = vpop.trf.xlu0
        %v571 = vrot.slane %v553, 4
        %v572 = vrot.slane %v554, 4
        %v575 = vsel %vm272, %v553, -inf
        %v576 = vrot.slane %v575, 4
        %v577 = vmax.f32 %v575, %v576
        %v578 = vrot.slane %v577, 2
        %v579 = vmax.f32 %v577, %v578
        %v580 = vrot.slane %v579, 1
        %v581 = vmax.f32 %v579, %v580
        %v582 = vsel %vm272, %v571, -inf
        %v583 = vrot.slane %v582, 4
        %v584 = vmax.f32 %v582, %v583
        %v585 = vrot.slane %v584, 2
        %v586 = vmax.f32 %v584, %v585
        %v587 = vrot.slane %v586, 1
        %v588 = vmax.f32 %v586, %v587
        %v589 = vsel %vm272, %v554, -inf
        %v590 = vrot.slane %v589, 4
        %v591 = vmax.f32 %v589, %v590
        %v592 = vrot.slane %v591, 2
        %v593 = vmax.f32 %v591, %v592
        %v594 = vrot.slane %v593, 1
        %v595 = vmax.f32 %v593, %v594
        %v596 = vsel %vm272, %v572, -inf
        %v597 = vrot.slane %v596, 4
        %v598 = vmax.f32 %v596, %v597
        %v599 = vrot.slane %v598, 2
        %v600 = vmax.f32 %v598, %v599
        %v601 = vrot.slane %v600, 1
        %v602 = vmax.f32 %v600, %v601
        %v607 = vsel %vm227, %v588, %v581
        %v608 = vsel %vm229, %v595, %v607
        %v609 = vsel %vm231, %v602, %v608
        %611 = vxpose.xlu0.b32.start [1/16] %v609, 128
        %612 = vxpose.xlu0.b32.cont [2/16] 0.0, 128
        %613 = vxpose.xlu0.b32.cont [3/16] 0.0, 128
        %614 = vxpose.xlu0.b32.cont [4/16] 0.0, 128
        %615 = vxpose.xlu0.b32.cont [5/16] 0.0, 128
        %616 = vxpose.xlu0.b32.cont [6/16] 0.0, 128
        %617 = vxpose.xlu0.b32.cont [7/16] 0.0, 128
        %618 = vxpose.xlu0.b32.cont [8/16] 0.0, 128
        %619 = vxpose.xlu0.b32.cont [9/16] 0.0, 128
        %620 = vxpose.xlu0.b32.cont [10/16] 0.0, 128
        %621 = vxpose.xlu0.b32.cont [11/16] 0.0, 128
        %622 = vxpose.xlu0.b32.cont [12/16] 0.0, 128
        %623 = vxpose.xlu0.b32.cont [13/16] 0.0, 128
        %624 = vxpose.xlu0.b32.cont [14/16] 0.0, 128
        %625 = vxpose.xlu0.b32.cont [15/16] 0.0, 128
        %626 = vxpose.xlu0.b32.end [16/16] 0.0, 128
        %v627 = vpop.trf.xlu0
        %v628 = vpop.trf.xlu0
        %v629 = vpop.trf.xlu0
        %v630 = vpop.trf.xlu0
        %v631 = vpop.trf.xlu0
        %v632 = vpop.trf.xlu0
        %v633 = vpop.trf.xlu0
        %v634 = vpop.trf.xlu0
        %v635 = vpop.trf.xlu0
        %v636 = vpop.trf.xlu0
        %v637 = vpop.trf.xlu0
        %v638 = vpop.trf.xlu0
        %v639 = vpop.trf.xlu0
        %v640 = vpop.trf.xlu0
        %v641 = vpop.trf.xlu0
        %v642 = vpop.trf.xlu0
        %v643 = vmul.f32 %v325, 4.0
        %v644 = vcvt.f32.s32.to.zero.pseudo %v643
        %v645 = vmul.f32 %v476, 4.0
        %v646 = vcvt.f32.s32.to.zero.pseudo %v645
        %v647 = vmul.u32 %v646, 2654435761
        %v648 = vxor.u32 %v644, %v647
        %v649 = vmul.f32 %v627, 4.0
        %v650 = vcvt.f32.s32.to.zero.pseudo %v649
        %v651 = vmul.u32 %v650, 805459861
        %v652 = vxor.u32 %v648, %v651
        %v653 = vand.u32 %v652, 4095
        %654 = vst.msk [vmem:[%s181] sm:$0xf] %vm272, %v653
        %v655 = vld [vmem:[%s177] sm:$0xff]
        %v656 = vld [vmem:[%s177 + $0x8] sm:$0xff]
        %v659 = vrot.slane %v655, 2
        %v660 = vrot.slane %v655, 4
        %v661 = vrot.slane %v655, 6
        %v662 = vrot.slane %v656, 2
        %v663 = vrot.slane %v656, 4
        %v664 = vrot.slane %v656, 6
        %vm671 = vcmask 123904
        %v672 = vsel %vm671, %v655, -inf
        %v673 = vrot.slane %v672, 4
        %v674 = vmax.f32 %v672, %v673
        %v675 = vrot.slane %v674, 2
        %v676 = vmax.f32 %v674, %v675
        %v677 = vrot.slane %v676, 1
        %v678 = vmax.f32 %v676, %v677
        %v679 = vsel %vm671, %v659, -inf
        %v680 = vrot.slane %v679, 4
        %v681 = vmax.f32 %v679, %v680
        %v682 = vrot.slane %v681, 2
        %v683 = vmax.f32 %v681, %v682
        %v684 = vrot.slane %v683, 1
        %v685 = vmax.f32 %v683, %v684
        %v686 = vsel %vm671, %v660, -inf
        %v687 = vrot.slane %v686, 4
        %v688 = vmax.f32 %v686, %v687
        %v689 = vrot.slane %v688, 2
        %v690 = vmax.f32 %v688, %v689
        %v691 = vrot.slane %v690, 1
        %v692 = vmax.f32 %v690, %v691
        %v693 = vsel %vm671, %v661, -inf
        %v694 = vrot.slane %v693, 4
        %v695 = vmax.f32 %v693, %v694
        %v696 = vrot.slane %v695, 2
        %v697 = vmax.f32 %v695, %v696
        %v698 = vrot.slane %v697, 1
        %v699 = vmax.f32 %v697, %v698
        %v700 = vsel %vm671, %v656, -inf
        %v701 = vrot.slane %v700, 4
        %v702 = vmax.f32 %v700, %v701
        %v703 = vrot.slane %v702, 2
        %v704 = vmax.f32 %v702, %v703
        %v705 = vrot.slane %v704, 1
        %v706 = vmax.f32 %v704, %v705
        %v707 = vsel %vm671, %v662, -inf
        %v708 = vrot.slane %v707, 4
        %v709 = vmax.f32 %v707, %v708
        %v710 = vrot.slane %v709, 2
        %v711 = vmax.f32 %v709, %v710
        %v712 = vrot.slane %v711, 1
        %v713 = vmax.f32 %v711, %v712
        %v714 = vsel %vm671, %v663, -inf
        %v715 = vrot.slane %v714, 4
        %v716 = vmax.f32 %v714, %v715
        %v717 = vrot.slane %v716, 2
        %v718 = vmax.f32 %v716, %v717
        %v719 = vrot.slane %v718, 1
        %v720 = vmax.f32 %v718, %v719
        %v721 = vsel %vm671, %v664, -inf
        %v722 = vrot.slane %v721, 4
        %v723 = vmax.f32 %v721, %v722
        %v724 = vrot.slane %v723, 2
        %v725 = vmax.f32 %v723, %v724
        %v726 = vrot.slane %v725, 1
        %v727 = vmax.f32 %v725, %v726
        %v736 = vsel %vm227, %v685, %v678
        %v737 = vsel %vm229, %v692, %v736
        %v738 = vsel %vm231, %v699, %v737
        %vm739 = vcmask 1044484
        %v740 = vsel %vm739, %v706, %v738
        %vm741 = vcmask 1045509
        %v742 = vsel %vm741, %v713, %v740
        %vm743 = vcmask 1046534
        %v744 = vsel %vm743, %v720, %v742
        %vm745 = vcmask 1047559
        %v746 = vsel %vm745, %v727, %v744
        %748 = vxpose.xlu0.b32.start [1/16] %v746, 128
        %749 = vxpose.xlu0.b32.cont [2/16] 0.0, 128
        %750 = vxpose.xlu0.b32.cont [3/16] 0.0, 128
        %751 = vxpose.xlu0.b32.cont [4/16] 0.0, 128
        %752 = vxpose.xlu0.b32.cont [5/16] 0.0, 128
        %753 = vxpose.xlu0.b32.cont [6/16] 0.0, 128
        %754 = vxpose.xlu0.b32.cont [7/16] 0.0, 128
        %755 = vxpose.xlu0.b32.cont [8/16] 0.0, 128
        %756 = vxpose.xlu0.b32.cont [9/16] 0.0, 128
        %757 = vxpose.xlu0.b32.cont [10/16] 0.0, 128
        %758 = vxpose.xlu0.b32.cont [11/16] 0.0, 128
        %759 = vxpose.xlu0.b32.cont [12/16] 0.0, 128
        %760 = vxpose.xlu0.b32.cont [13/16] 0.0, 128
        %761 = vxpose.xlu0.b32.cont [14/16] 0.0, 128
        %762 = vxpose.xlu0.b32.cont [15/16] 0.0, 128
        %763 = vxpose.xlu0.b32.end [16/16] 0.0, 128
        %v764 = vpop.trf.xlu0
        %v765 = vpop.trf.xlu0
        %v766 = vpop.trf.xlu0
        %v767 = vpop.trf.xlu0
        %v768 = vpop.trf.xlu0
        %v769 = vpop.trf.xlu0
        %v770 = vpop.trf.xlu0
        %v771 = vpop.trf.xlu0
        %v772 = vpop.trf.xlu0
        %v773 = vpop.trf.xlu0
        %v774 = vpop.trf.xlu0
        %v775 = vpop.trf.xlu0
        %v776 = vpop.trf.xlu0
        %v777 = vpop.trf.xlu0
        %v778 = vpop.trf.xlu0
        %v779 = vpop.trf.xlu0
        %v782 = vrot.slane %v764, 2
        %v783 = vrot.slane %v764, 4
        %v784 = vrot.slane %v764, 6
        %v785 = vrot.slane %v765, 2
        %v786 = vrot.slane %v765, 4
        %v787 = vrot.slane %v765, 6
        %vm794 = vcmask 58368
        %v795 = vsel %vm794, %v764, -inf
        %v796 = vrot.slane %v795, 4
        %v797 = vmax.f32 %v795, %v796
        %v798 = vrot.slane %v797, 2
        %v799 = vmax.f32 %v797, %v798
        %v800 = vrot.slane %v799, 1
        %v801 = vmax.f32 %v799, %v800
        %v802 = vsel %vm794, %v782, -inf
        %v803 = vrot.slane %v802, 4
        %v804 = vmax.f32 %v802, %v803
        %v805 = vrot.slane %v804, 2
        %v806 = vmax.f32 %v804, %v805
        %v807 = vrot.slane %v806, 1
        %v808 = vmax.f32 %v806, %v807
        %v809 = vsel %vm794, %v783, -inf
        %v810 = vrot.slane %v809, 4
        %v811 = vmax.f32 %v809, %v810
        %v812 = vrot.slane %v811, 2
        %v813 = vmax.f32 %v811, %v812
        %v814 = vrot.slane %v813, 1
        %v815 = vmax.f32 %v813, %v814
        %v816 = vsel %vm794, %v784, -inf
        %v817 = vrot.slane %v816, 4
        %v818 = vmax.f32 %v816, %v817
        %v819 = vrot.slane %v818, 2
        %v820 = vmax.f32 %v818, %v819
        %v821 = vrot.slane %v820, 1
        %v822 = vmax.f32 %v820, %v821
        %v823 = vsel %vm794, %v765, -inf
        %v824 = vrot.slane %v823, 4
        %v825 = vmax.f32 %v823, %v824
        %v826 = vrot.slane %v825, 2
        %v827 = vmax.f32 %v825, %v826
        %v828 = vrot.slane %v827, 1
        %v829 = vmax.f32 %v827, %v828
        %v830 = vsel %vm794, %v785, -inf
        %v831 = vrot.slane %v830, 4
        %v832 = vmax.f32 %v830, %v831
        %v833 = vrot.slane %v832, 2
        %v834 = vmax.f32 %v832, %v833
        %v835 = vrot.slane %v834, 1
        %v836 = vmax.f32 %v834, %v835
        %v837 = vsel %vm794, %v786, -inf
        %v838 = vrot.slane %v837, 4
        %v839 = vmax.f32 %v837, %v838
        %v840 = vrot.slane %v839, 2
        %v841 = vmax.f32 %v839, %v840
        %v842 = vrot.slane %v841, 1
        %v843 = vmax.f32 %v841, %v842
        %v844 = vsel %vm794, %v787, -inf
        %v845 = vrot.slane %v844, 4
        %v846 = vmax.f32 %v844, %v845
        %v847 = vrot.slane %v846, 2
        %v848 = vmax.f32 %v846, %v847
        %v849 = vrot.slane %v848, 1
        %v850 = vmax.f32 %v848, %v849
        %v859 = vsel %vm227, %v808, %v801
        %v860 = vsel %vm229, %v815, %v859
        %v861 = vsel %vm231, %v822, %v860
        %v862 = vsel %vm739, %v829, %v861
        %v863 = vsel %vm741, %v836, %v862
        %v864 = vsel %vm743, %v843, %v863
        %v865 = vsel %vm745, %v850, %v864
        %867 = vxpose.xlu0.b32.start [1/16] %v865, 128
        %868 = vxpose.xlu0.b32.cont [2/16] 0.0, 128
        %869 = vxpose.xlu0.b32.cont [3/16] 0.0, 128
        %870 = vxpose.xlu0.b32.cont [4/16] 0.0, 128
        %871 = vxpose.xlu0.b32.cont [5/16] 0.0, 128
        %872 = vxpose.xlu0.b32.cont [6/16] 0.0, 128
        %873 = vxpose.xlu0.b32.cont [7/16] 0.0, 128
        %874 = vxpose.xlu0.b32.cont [8/16] 0.0, 128
        %875 = vxpose.xlu0.b32.cont [9/16] 0.0, 128
        %876 = vxpose.xlu0.b32.cont [10/16] 0.0, 128
        %877 = vxpose.xlu0.b32.cont [11/16] 0.0, 128
        %878 = vxpose.xlu0.b32.cont [12/16] 0.0, 128
        %879 = vxpose.xlu0.b32.cont [13/16] 0.0, 128
        %880 = vxpose.xlu0.b32.cont [14/16] 0.0, 128
        %881 = vxpose.xlu0.b32.cont [15/16] 0.0, 128
        %882 = vxpose.xlu0.b32.end [16/16] 0.0, 128
        %v883 = vpop.trf.xlu0
        %v884 = vpop.trf.xlu0
        %v885 = vpop.trf.xlu0
        %v886 = vpop.trf.xlu0
        %v887 = vpop.trf.xlu0
        %v888 = vpop.trf.xlu0
        %v889 = vpop.trf.xlu0
        %v890 = vpop.trf.xlu0
        %v891 = vpop.trf.xlu0
        %v892 = vpop.trf.xlu0
        %v893 = vpop.trf.xlu0
        %v894 = vpop.trf.xlu0
        %v895 = vpop.trf.xlu0
        %v896 = vpop.trf.xlu0
        %v897 = vpop.trf.xlu0
        %v898 = vpop.trf.xlu0
        %v899 = vld [vmem:[%s341] sm:$0xff]
        %v900 = vld [vmem:[%s341 + $0x8] sm:$0xff]
        %v903 = vrot.slane %v899, 2
        %v904 = vrot.slane %v899, 4
        %v905 = vrot.slane %v899, 6
        %v906 = vrot.slane %v900, 2
        %v907 = vrot.slane %v900, 4
        %v908 = vrot.slane %v900, 6
        %v915 = vsel %vm671, %v899, -inf
        %v916 = vrot.slane %v915, 4
        %v917 = vmax.f32 %v915, %v916
        %v918 = vrot.slane %v917, 2
        %v919 = vmax.f32 %v917, %v918
        %v920 = vrot.slane %v919, 1
        %v921 = vmax.f32 %v919, %v920
        %v922 = vsel %vm671, %v903, -inf
        %v923 = vrot.slane %v922, 4
        %v924 = vmax.f32 %v922, %v923
        %v925 = vrot.slane %v924, 2
        %v926 = vmax.f32 %v924, %v925
        %v927 = vrot.slane %v926, 1
        %v928 = vmax.f32 %v926, %v927
        %v929 = vsel %vm671, %v904, -inf
        %v930 = vrot.slane %v929, 4
        %v931 = vmax.f32 %v929, %v930
        %v932 = vrot.slane %v931, 2
        %v933 = vmax.f32 %v931, %v932
        %v934 = vrot.slane %v933, 1
        %v935 = vmax.f32 %v933, %v934
        %v936 = vsel %vm671, %v905, -inf
        %v937 = vrot.slane %v936, 4
        %v938 = vmax.f32 %v936, %v937
        %v939 = vrot.slane %v938, 2
        %v940 = vmax.f32 %v938, %v939
        %v941 = vrot.slane %v940, 1
        %v942 = vmax.f32 %v940, %v941
        %v943 = vsel %vm671, %v900, -inf
        %v944 = vrot.slane %v943, 4
        %v945 = vmax.f32 %v943, %v944
        %v946 = vrot.slane %v945, 2
        %v947 = vmax.f32 %v945, %v946
        %v948 = vrot.slane %v947, 1
        %v949 = vmax.f32 %v947, %v948
        %v950 = vsel %vm671, %v906, -inf
        %v951 = vrot.slane %v950, 4
        %v952 = vmax.f32 %v950, %v951
        %v953 = vrot.slane %v952, 2
        %v954 = vmax.f32 %v952, %v953
        %v955 = vrot.slane %v954, 1
        %v956 = vmax.f32 %v954, %v955
        %v957 = vsel %vm671, %v907, -inf
        %v958 = vrot.slane %v957, 4
        %v959 = vmax.f32 %v957, %v958
        %v960 = vrot.slane %v959, 2
        %v961 = vmax.f32 %v959, %v960
        %v962 = vrot.slane %v961, 1
        %v963 = vmax.f32 %v961, %v962
        %v964 = vsel %vm671, %v908, -inf
        %v965 = vrot.slane %v964, 4
        %v966 = vmax.f32 %v964, %v965
        %v967 = vrot.slane %v966, 2
        %v968 = vmax.f32 %v966, %v967
        %v969 = vrot.slane %v968, 1
        %v970 = vmax.f32 %v968, %v969
        %v979 = vsel %vm227, %v928, %v921
        %v980 = vsel %vm229, %v935, %v979
        %v981 = vsel %vm231, %v942, %v980
        %v982 = vsel %vm739, %v949, %v981
        %v983 = vsel %vm741, %v956, %v982
        %v984 = vsel %vm743, %v963, %v983
        %v985 = vsel %vm745, %v970, %v984
        %987 = vxpose.xlu0.b32.start [1/16] %v985, 128
        %988 = vxpose.xlu0.b32.cont [2/16] 0.0, 128
        %989 = vxpose.xlu0.b32.cont [3/16] 0.0, 128
        %990 = vxpose.xlu0.b32.cont [4/16] 0.0, 128
        %991 = vxpose.xlu0.b32.cont [5/16] 0.0, 128
        %992 = vxpose.xlu0.b32.cont [6/16] 0.0, 128
        %993 = vxpose.xlu0.b32.cont [7/16] 0.0, 128
        %994 = vxpose.xlu0.b32.cont [8/16] 0.0, 128
        %995 = vxpose.xlu0.b32.cont [9/16] 0.0, 128
        %996 = vxpose.xlu0.b32.cont [10/16] 0.0, 128
        %997 = vxpose.xlu0.b32.cont [11/16] 0.0, 128
        %998 = vxpose.xlu0.b32.cont [12/16] 0.0, 128
        %999 = vxpose.xlu0.b32.cont [13/16] 0.0, 128
        %1000 = vxpose.xlu0.b32.cont [14/16] 0.0, 128
        %1001 = vxpose.xlu0.b32.cont [15/16] 0.0, 128
        %1002 = vxpose.xlu0.b32.end [16/16] 0.0, 128
        %v1003 = vpop.trf.xlu0
        %v1004 = vpop.trf.xlu0
        %v1005 = vpop.trf.xlu0
        %v1006 = vpop.trf.xlu0
        %v1007 = vpop.trf.xlu0
        %v1008 = vpop.trf.xlu0
        %v1009 = vpop.trf.xlu0
        %v1010 = vpop.trf.xlu0
        %v1011 = vpop.trf.xlu0
        %v1012 = vpop.trf.xlu0
        %v1013 = vpop.trf.xlu0
        %v1014 = vpop.trf.xlu0
        %v1015 = vpop.trf.xlu0
        %v1016 = vpop.trf.xlu0
        %v1017 = vpop.trf.xlu0
        %v1018 = vpop.trf.xlu0
        %v1021 = vrot.slane %v1003, 2
        %v1022 = vrot.slane %v1003, 4
        %v1023 = vrot.slane %v1003, 6
        %v1024 = vrot.slane %v1004, 2
        %v1025 = vrot.slane %v1004, 4
        %v1026 = vrot.slane %v1004, 6
        %v1033 = vsel %vm794, %v1003, -inf
        %v1034 = vrot.slane %v1033, 4
        %v1035 = vmax.f32 %v1033, %v1034
        %v1036 = vrot.slane %v1035, 2
        %v1037 = vmax.f32 %v1035, %v1036
        %v1038 = vrot.slane %v1037, 1
        %v1039 = vmax.f32 %v1037, %v1038
        %v1040 = vsel %vm794, %v1021, -inf
        %v1041 = vrot.slane %v1040, 4
        %v1042 = vmax.f32 %v1040, %v1041
        %v1043 = vrot.slane %v1042, 2
        %v1044 = vmax.f32 %v1042, %v1043
        %v1045 = vrot.slane %v1044, 1
        %v1046 = vmax.f32 %v1044, %v1045
        %v1047 = vsel %vm794, %v1022, -inf
        %v1048 = vrot.slane %v1047, 4
        %v1049 = vmax.f32 %v1047, %v1048
        %v1050 = vrot.slane %v1049, 2
        %v1051 = vmax.f32 %v1049, %v1050
        %v1052 = vrot.slane %v1051, 1
        %v1053 = vmax.f32 %v1051, %v1052
        %v1054 = vsel %vm794, %v1023, -inf
        %v1055 = vrot.slane %v1054, 4
        %v1056 = vmax.f32 %v1054, %v1055
        %v1057 = vrot.slane %v1056, 2
        %v1058 = vmax.f32 %v1056, %v1057
        %v1059 = vrot.slane %v1058, 1
        %v1060 = vmax.f32 %v1058, %v1059
        %v1061 = vsel %vm794, %v1004, -inf
        %v1062 = vrot.slane %v1061, 4
        %v1063 = vmax.f32 %v1061, %v1062
        %v1064 = vrot.slane %v1063, 2
        %v1065 = vmax.f32 %v1063, %v1064
        %v1066 = vrot.slane %v1065, 1
        %v1067 = vmax.f32 %v1065, %v1066
        %v1068 = vsel %vm794, %v1024, -inf
        %v1069 = vrot.slane %v1068, 4
        %v1070 = vmax.f32 %v1068, %v1069
        %v1071 = vrot.slane %v1070, 2
        %v1072 = vmax.f32 %v1070, %v1071
        %v1073 = vrot.slane %v1072, 1
        %v1074 = vmax.f32 %v1072, %v1073
        %v1075 = vsel %vm794, %v1025, -inf
        %v1076 = vrot.slane %v1075, 4
        %v1077 = vmax.f32 %v1075, %v1076
        %v1078 = vrot.slane %v1077, 2
        %v1079 = vmax.f32 %v1077, %v1078
        %v1080 = vrot.slane %v1079, 1
        %v1081 = vmax.f32 %v1079, %v1080
        %v1082 = vsel %vm794, %v1026, -inf
        %v1083 = vrot.slane %v1082, 4
        %v1084 = vmax.f32 %v1082, %v1083
        %v1085 = vrot.slane %v1084, 2
        %v1086 = vmax.f32 %v1084, %v1085
        %v1087 = vrot.slane %v1086, 1
        %v1088 = vmax.f32 %v1086, %v1087
        %v1097 = vsel %vm227, %v1046, %v1039
        %v1098 = vsel %vm229, %v1053, %v1097
        %v1099 = vsel %vm231, %v1060, %v1098
        %v1100 = vsel %vm739, %v1067, %v1099
        %v1101 = vsel %vm741, %v1074, %v1100
        %v1102 = vsel %vm743, %v1081, %v1101
        %v1103 = vsel %vm745, %v1088, %v1102
        %1105 = vxpose.xlu0.b32.start [1/16] %v1103, 128
        %1106 = vxpose.xlu0.b32.cont [2/16] 0.0, 128
        %1107 = vxpose.xlu0.b32.cont [3/16] 0.0, 128
        %1108 = vxpose.xlu0.b32.cont [4/16] 0.0, 128
        %1109 = vxpose.xlu0.b32.cont [5/16] 0.0, 128
        %1110 = vxpose.xlu0.b32.cont [6/16] 0.0, 128
        %1111 = vxpose.xlu0.b32.cont [7/16] 0.0, 128
        %1112 = vxpose.xlu0.b32.cont [8/16] 0.0, 128
        %1113 = vxpose.xlu0.b32.cont [9/16] 0.0, 128
        %1114 = vxpose.xlu0.b32.cont [10/16] 0.0, 128
        %1115 = vxpose.xlu0.b32.cont [11/16] 0.0, 128
        %1116 = vxpose.xlu0.b32.cont [12/16] 0.0, 128
        %1117 = vxpose.xlu0.b32.cont [13/16] 0.0, 128
        %1118 = vxpose.xlu0.b32.cont [14/16] 0.0, 128
        %1119 = vxpose.xlu0.b32.cont [15/16] 0.0, 128
        %1120 = vxpose.xlu0.b32.end [16/16] 0.0, 128
        %v1121 = vpop.trf.xlu0
        %v1122 = vpop.trf.xlu0
        %v1123 = vpop.trf.xlu0
        %v1124 = vpop.trf.xlu0
        %v1125 = vpop.trf.xlu0
        %v1126 = vpop.trf.xlu0
        %v1127 = vpop.trf.xlu0
        %v1128 = vpop.trf.xlu0
        %v1129 = vpop.trf.xlu0
        %v1130 = vpop.trf.xlu0
        %v1131 = vpop.trf.xlu0
        %v1132 = vpop.trf.xlu0
        %v1133 = vpop.trf.xlu0
        %v1134 = vpop.trf.xlu0
        %v1135 = vpop.trf.xlu0
        %v1136 = vpop.trf.xlu0
        %v1137 = vld [vmem:[%s492] sm:$0xff]
        %v1138 = vld [vmem:[%s492 + $0x8] sm:$0xff]
        %v1141 = vrot.slane %v1137, 2
        %v1142 = vrot.slane %v1137, 4
        %v1143 = vrot.slane %v1137, 6
        %v1144 = vrot.slane %v1138, 2
        %v1145 = vrot.slane %v1138, 4
        %v1146 = vrot.slane %v1138, 6
        %v1153 = vsel %vm671, %v1137, -inf
        %v1154 = vrot.slane %v1153, 4
        %v1155 = vmax.f32 %v1153, %v1154
        %v1156 = vrot.slane %v1155, 2
        %v1157 = vmax.f32 %v1155, %v1156
        %v1158 = vrot.slane %v1157, 1
        %v1159 = vmax.f32 %v1157, %v1158
        %v1160 = vsel %vm671, %v1141, -inf
        %v1161 = vrot.slane %v1160, 4
        %v1162 = vmax.f32 %v1160, %v1161
        %v1163 = vrot.slane %v1162, 2
        %v1164 = vmax.f32 %v1162, %v1163
        %v1165 = vrot.slane %v1164, 1
        %v1166 = vmax.f32 %v1164, %v1165
        %v1167 = vsel %vm671, %v1142, -inf
        %v1168 = vrot.slane %v1167, 4
        %v1169 = vmax.f32 %v1167, %v1168
        %v1170 = vrot.slane %v1169, 2
        %v1171 = vmax.f32 %v1169, %v1170
        %v1172 = vrot.slane %v1171, 1
        %v1173 = vmax.f32 %v1171, %v1172
        %v1174 = vsel %vm671, %v1143, -inf
        %v1175 = vrot.slane %v1174, 4
        %v1176 = vmax.f32 %v1174, %v1175
        %v1177 = vrot.slane %v1176, 2
        %v1178 = vmax.f32 %v1176, %v1177
        %v1179 = vrot.slane %v1178, 1
        %v1180 = vmax.f32 %v1178, %v1179
        %v1181 = vsel %vm671, %v1138, -inf
        %v1182 = vrot.slane %v1181, 4
        %v1183 = vmax.f32 %v1181, %v1182
        %v1184 = vrot.slane %v1183, 2
        %v1185 = vmax.f32 %v1183, %v1184
        %v1186 = vrot.slane %v1185, 1
        %v1187 = vmax.f32 %v1185, %v1186
        %v1188 = vsel %vm671, %v1144, -inf
        %v1189 = vrot.slane %v1188, 4
        %v1190 = vmax.f32 %v1188, %v1189
        %v1191 = vrot.slane %v1190, 2
        %v1192 = vmax.f32 %v1190, %v1191
        %v1193 = vrot.slane %v1192, 1
        %v1194 = vmax.f32 %v1192, %v1193
        %v1195 = vsel %vm671, %v1145, -inf
        %v1196 = vrot.slane %v1195, 4
        %v1197 = vmax.f32 %v1195, %v1196
        %v1198 = vrot.slane %v1197, 2
        %v1199 = vmax.f32 %v1197, %v1198
        %v1200 = vrot.slane %v1199, 1
        %v1201 = vmax.f32 %v1199, %v1200
        %v1202 = vsel %vm671, %v1146, -inf
        %v1203 = vrot.slane %v1202, 4
        %v1204 = vmax.f32 %v1202, %v1203
        %v1205 = vrot.slane %v1204, 2
        %v1206 = vmax.f32 %v1204, %v1205
        %v1207 = vrot.slane %v1206, 1
        %v1208 = vmax.f32 %v1206, %v1207
        %v1217 = vsel %vm227, %v1166, %v1159
        %v1218 = vsel %vm229, %v1173, %v1217
        %v1219 = vsel %vm231, %v1180, %v1218
        %v1220 = vsel %vm739, %v1187, %v1219
        %v1221 = vsel %vm741, %v1194, %v1220
        %v1222 = vsel %vm743, %v1201, %v1221
        %v1223 = vsel %vm745, %v1208, %v1222
        %1225 = vxpose.xlu0.b32.start [1/16] %v1223, 128
        %1226 = vxpose.xlu0.b32.cont [2/16] 0.0, 128
        %1227 = vxpose.xlu0.b32.cont [3/16] 0.0, 128
        %1228 = vxpose.xlu0.b32.cont [4/16] 0.0, 128
        %1229 = vxpose.xlu0.b32.cont [5/16] 0.0, 128
        %1230 = vxpose.xlu0.b32.cont [6/16] 0.0, 128
        %1231 = vxpose.xlu0.b32.cont [7/16] 0.0, 128
        %1232 = vxpose.xlu0.b32.cont [8/16] 0.0, 128
        %1233 = vxpose.xlu0.b32.cont [9/16] 0.0, 128
        %1234 = vxpose.xlu0.b32.cont [10/16] 0.0, 128
        %1235 = vxpose.xlu0.b32.cont [11/16] 0.0, 128
        %1236 = vxpose.xlu0.b32.cont [12/16] 0.0, 128
        %1237 = vxpose.xlu0.b32.cont [13/16] 0.0, 128
        %1238 = vxpose.xlu0.b32.cont [14/16] 0.0, 128
        %1239 = vxpose.xlu0.b32.cont [15/16] 0.0, 128
        %1240 = vxpose.xlu0.b32.end [16/16] 0.0, 128
        %v1241 = vpop.trf.xlu0
        %v1242 = vpop.trf.xlu0
        %v1243 = vpop.trf.xlu0
        %v1244 = vpop.trf.xlu0
        %v1245 = vpop.trf.xlu0
        %v1246 = vpop.trf.xlu0
        %v1247 = vpop.trf.xlu0
        %v1248 = vpop.trf.xlu0
        %v1249 = vpop.trf.xlu0
        %v1250 = vpop.trf.xlu0
        %v1251 = vpop.trf.xlu0
        %v1252 = vpop.trf.xlu0
        %v1253 = vpop.trf.xlu0
        %v1254 = vpop.trf.xlu0
        %v1255 = vpop.trf.xlu0
        %v1256 = vpop.trf.xlu0
        %v1259 = vrot.slane %v1241, 2
        %v1260 = vrot.slane %v1241, 4
        %v1261 = vrot.slane %v1241, 6
        %v1262 = vrot.slane %v1242, 2
        %v1263 = vrot.slane %v1242, 4
        %v1264 = vrot.slane %v1242, 6
        %v1271 = vsel %vm794, %v1241, -inf
        %v1272 = vrot.slane %v1271, 4
        %v1273 = vmax.f32 %v1271, %v1272
        %v1274 = vrot.slane %v1273, 2
        %v1275 = vmax.f32 %v1273, %v1274
        %v1276 = vrot.slane %v1275, 1
        %v1277 = vmax.f32 %v1275, %v1276
        %v1278 = vsel %vm794, %v1259, -inf
        %v1279 = vrot.slane %v1278, 4
        %v1280 = vmax.f32 %v1278, %v1279
        %v1281 = vrot.slane %v1280, 2
        %v1282 = vmax.f32 %v1280, %v1281
        %v1283 = vrot.slane %v1282, 1
        %v1284 = vmax.f32 %v1282, %v1283
        %v1285 = vsel %vm794, %v1260, -inf
        %v1286 = vrot.slane %v1285, 4
        %v1287 = vmax.f32 %v1285, %v1286
        %v1288 = vrot.slane %v1287, 2
        %v1289 = vmax.f32 %v1287, %v1288
        %v1290 = vrot.slane %v1289, 1
        %v1291 = vmax.f32 %v1289, %v1290
        %v1292 = vsel %vm794, %v1261, -inf
        %v1293 = vrot.slane %v1292, 4
        %v1294 = vmax.f32 %v1292, %v1293
        %v1295 = vrot.slane %v1294, 2
        %v1296 = vmax.f32 %v1294, %v1295
        %v1297 = vrot.slane %v1296, 1
        %v1298 = vmax.f32 %v1296, %v1297
        %v1299 = vsel %vm794, %v1242, -inf
        %v1300 = vrot.slane %v1299, 4
        %v1301 = vmax.f32 %v1299, %v1300
        %v1302 = vrot.slane %v1301, 2
        %v1303 = vmax.f32 %v1301, %v1302
        %v1304 = vrot.slane %v1303, 1
        %v1305 = vmax.f32 %v1303, %v1304
        %v1306 = vsel %vm794, %v1262, -inf
        %v1307 = vrot.slane %v1306, 4
        %v1308 = vmax.f32 %v1306, %v1307
        %v1309 = vrot.slane %v1308, 2
        %v1310 = vmax.f32 %v1308, %v1309
        %v1311 = vrot.slane %v1310, 1
        %v1312 = vmax.f32 %v1310, %v1311
        %v1313 = vsel %vm794, %v1263, -inf
        %v1314 = vrot.slane %v1313, 4
        %v1315 = vmax.f32 %v1313, %v1314
        %v1316 = vrot.slane %v1315, 2
        %v1317 = vmax.f32 %v1315, %v1316
        %v1318 = vrot.slane %v1317, 1
        %v1319 = vmax.f32 %v1317, %v1318
        %v1320 = vsel %vm794, %v1264, -inf
        %v1321 = vrot.slane %v1320, 4
        %v1322 = vmax.f32 %v1320, %v1321
        %v1323 = vrot.slane %v1322, 2
        %v1324 = vmax.f32 %v1322, %v1323
        %v1325 = vrot.slane %v1324, 1
        %v1326 = vmax.f32 %v1324, %v1325
        %v1335 = vsel %vm227, %v1284, %v1277
        %v1336 = vsel %vm229, %v1291, %v1335
        %v1337 = vsel %vm231, %v1298, %v1336
        %v1338 = vsel %vm739, %v1305, %v1337
        %v1339 = vsel %vm741, %v1312, %v1338
        %v1340 = vsel %vm743, %v1319, %v1339
        %v1341 = vsel %vm745, %v1326, %v1340
        %1343 = vxpose.xlu0.b32.start [1/16] %v1341, 128
        %1344 = vxpose.xlu0.b32.cont [2/16] 0.0, 128
        %1345 = vxpose.xlu0.b32.cont [3/16] 0.0, 128
        %1346 = vxpose.xlu0.b32.cont [4/16] 0.0, 128
        %1347 = vxpose.xlu0.b32.cont [5/16] 0.0, 128
        %1348 = vxpose.xlu0.b32.cont [6/16] 0.0, 128
        %1349 = vxpose.xlu0.b32.cont [7/16] 0.0, 128
        %1350 = vxpose.xlu0.b32.cont [8/16] 0.0, 128
        %1351 = vxpose.xlu0.b32.cont [9/16] 0.0, 128
        %1352 = vxpose.xlu0.b32.cont [10/16] 0.0, 128
        %1353 = vxpose.xlu0.b32.cont [11/16] 0.0, 128
        %1354 = vxpose.xlu0.b32.cont [12/16] 0.0, 128
        %1355 = vxpose.xlu0.b32.cont [13/16] 0.0, 128
        %1356 = vxpose.xlu0.b32.cont [14/16] 0.0, 128
        %1357 = vxpose.xlu0.b32.cont [15/16] 0.0, 128
        %1358 = vxpose.xlu0.b32.end [16/16] 0.0, 128
        %v1359 = vpop.trf.xlu0
        %v1360 = vpop.trf.xlu0
        %v1361 = vpop.trf.xlu0
        %v1362 = vpop.trf.xlu0
        %v1363 = vpop.trf.xlu0
        %v1364 = vpop.trf.xlu0
        %v1365 = vpop.trf.xlu0
        %v1366 = vpop.trf.xlu0
        %v1367 = vpop.trf.xlu0
        %v1368 = vpop.trf.xlu0
        %v1369 = vpop.trf.xlu0
        %v1370 = vpop.trf.xlu0
        %v1371 = vpop.trf.xlu0
        %v1372 = vpop.trf.xlu0
        %v1373 = vpop.trf.xlu0
        %v1374 = vpop.trf.xlu0
        %v1375 = vmul.f32 %v883, 6.0
        %v1376 = vcvt.f32.s32.to.zero.pseudo %v1375
        %v1377 = vmul.f32 %v1121, 6.0
        %v1378 = vcvt.f32.s32.to.zero.pseudo %v1377
        %v1379 = vmul.u32 %v1378, 2654435761
        %v1380 = vxor.u32 %v1376, %v1379
        %v1381 = vmul.f32 %v1359, 6.0
        %v1382 = vcvt.f32.s32.to.zero.pseudo %v1381
        %v1383 = vmul.u32 %v1382, 805459861
        %v1384 = vxor.u32 %v1380, %v1383
        %v1385 = vand.u32 %v1384, 4095
        %vm1386 = vcmask 64512
        %1387 = vst.msk [vmem:[%s185] sm:$0xff] %vm1386, %v1385
        %v1388 = vld [vmem:[%s177] sm:$0xff]
        %v1389 = vld [vmem:[%s177 + $0x8] sm:$0xff]
        %v1390 = vld [vmem:[%s341] sm:$0xff]
        %v1391 = vld [vmem:[%s341 + $0x8] sm:$0xff]
        %v1392 = vld [vmem:[%s492] sm:$0xff]
        %v1393 = vld [vmem:[%s492 + $0x8] sm:$0xff]
        %v1394 = vmul.f32 %v1388, 10.0
        %v1395 = vmul.f32 %v1389, 10.0
        %v1396 = vcvt.f32.s32.to.zero.pseudo %v1394
        %v1397 = vcvt.f32.s32.to.zero.pseudo %v1395
        %v1398 = vmul.f32 %v1390, 10.0
        %v1399 = vmul.f32 %v1391, 10.0
        %v1400 = vcvt.f32.s32.to.zero.pseudo %v1398
        %v1401 = vcvt.f32.s32.to.zero.pseudo %v1399
        %v1402 = vmul.u32 %v1400, 2654435761
        %v1403 = vmul.u32 %v1401, 2654435761
        %v1404 = vxor.u32 %v1396, %v1402
        %v1405 = vxor.u32 %v1397, %v1403
        %v1406 = vmul.f32 %v1392, 10.0
        %v1407 = vmul.f32 %v1393, 10.0
        %v1408 = vcvt.f32.s32.to.zero.pseudo %v1406
        %v1409 = vcvt.f32.s32.to.zero.pseudo %v1407
        %v1410 = vmul.u32 %v1408, 805459861
        %v1411 = vmul.u32 %v1409, 805459861
        %v1412 = vxor.u32 %v1404, %v1410
        %v1413 = vxor.u32 %v1405, %v1411
        %v1414 = vand.u32 %v1412, 4095
        %v1415 = vand.u32 %v1413, 4095
        %vm1416 = vcmask 130048
        %1417 = vst.msk [vmem:[%s172] sm:$0xff] %vm1416, %v1414
        %1418 = vst.msk [vmem:[%s172 + $0x8] sm:$0xff] %vm1416, %v1415
        %v1419 = vmul.f32 %v1388, 15.0
        %v1420 = vmul.f32 %v1389, 15.0
        %v1421 = vcvt.f32.s32.to.zero.pseudo %v1419
        %v1422 = vcvt.f32.s32.to.zero.pseudo %v1420
        %v1423 = vmul.f32 %v1390, 15.0
        %v1424 = vmul.f32 %v1391, 15.0
        %v1425 = vcvt.f32.s32.to.zero.pseudo %v1423
        %v1426 = vcvt.f32.s32.to.zero.pseudo %v1424
        %v1427 = vmul.u32 %v1425, 2654435761
        %v1428 = vmul.u32 %v1426, 2654435761
        %v1429 = vxor.u32 %v1421, %v1427
        %v1430 = vxor.u32 %v1422, %v1428
        %v1431 = vmul.f32 %v1392, 15.0
        %v1432 = vmul.f32 %v1393, 15.0
        %v1433 = vcvt.f32.s32.to.zero.pseudo %v1431
        %v1434 = vcvt.f32.s32.to.zero.pseudo %v1432
        %v1435 = vmul.u32 %v1433, 805459861
        %v1436 = vmul.u32 %v1434, 805459861
        %v1437 = vxor.u32 %v1429, %v1435
        %v1438 = vxor.u32 %v1430, %v1436
        %v1439 = vand.u32 %v1437, 4095
        %v1440 = vand.u32 %v1438, 4095
        %s1441 = scalar_lea.vmem %s172, 16 [#allocation2]
        %1442 = vst.msk [vmem:[%s1441] sm:$0xff] %vm1416, %v1439
        %1443 = vst.msk [vmem:[%s1441 + $0x8] sm:$0xff] %vm1416, %v1440
        %p1444 = scmp.lt.s32.totalorder %s15, 1
        %s1445 = scalar_select %p1444, %s15, 1
        %s1446 = smul.addr %s1445, 4
        %s1447 = scalar_lea.vmem %s1, %s1446
        %p1448 = scmp.lt.s32.totalorder %s15, 1
        %s1449 = scalar_select %p1448, %s15, 1
        %s1450 = smul.addr %s1449, 8
        %s1451 = scalar_lea.vmem %s2, %s1450
        %s1452 = sand.u32 %s101, 1
        %s1453 = sand.u32 %s101, 1
        %s1454 = smul.addr %s1453, 32
        %s1455 = scalar_lea.vmem [#allocation2], %s1454
        // Predicated region
        $region25: #{multires_hash_encoding.2} parent=23 // pred_check
          %p1456 = pneg %p59
        $region26: #{multires_hash_encoding.2} parent=23 // pred_check_branch
          %1458 = sbr.rel (%p1456) target = $region28
        $region27: #{multires_hash_encoding.2} parent=23 // pred_region
          _
        $region28: #{multires_hash_encoding.2} parent=23 // pred_fallthru
          _
        // Predicated region
        $region29: #{multires_hash_encoding.2} parent=23 // pred_check
          %p1459 = pneg %p85
        $region30: #{multires_hash_encoding.2} parent=23 // pred_check_branch
          %1461 = sbr.rel (%p1459) target = $region32
        $region31: #{multires_hash_encoding.2} parent=23 // pred_region
          _
        $region32: #{multires_hash_encoding.2} parent=23 // pred_fallthru
          _
        // Predicated region
        $region33: #{multires_hash_encoding.2} parent=23 // pred_check
          %p1462 = pneg %p111
        $region34: #{multires_hash_encoding.2} parent=23 // pred_check_branch
          %1464 = sbr.rel (%p1462) target = $region36
        $region35: #{multires_hash_encoding.2} parent=23 // pred_region
          %s1465 = smul.addr %s15, 2
          %s1466 = smul.addr %s1465, 8
          %s1467 = scalar_lea.vmem %s3, %s1466
          // Predicated region
          $region37: #{multires_hash_encoding.2} parent=35 // pred_check
            _
          $region38: #{multires_hash_encoding.2} parent=35 // pred_check_branch
            %1469 = sbr.rel (0) target = $region40
          $region39: #{multires_hash_encoding.2} parent=35 // pred_region
            // Predicated region
            $region41: #{multires_hash_encoding.2} parent=39 // pred_check
              _
            $region42: #{multires_hash_encoding.2} parent=39 // pred_check_branch
              %1471 = sbr.rel (0) target = $region44
            $region43: #{multires_hash_encoding.2} parent=39 // pred_region
              // Predicated region
              $region56: #{multires_hash_encoding.2} parent=43 // pred_check
                _
              $region57: #{multires_hash_encoding.2} parent=43 // pred_check_branch
                %1493 = sbr.rel (0) target = $region59
              $region58: #{multires_hash_encoding.2} parent=43 // pred_region
                loop: start=0, step=1, limit=1
                $region60: #{multires_hash_encoding.2} parent=58 // loop_pre_header
                  _
                $region61: #{multires_hash_encoding.2} parent=58 // loop_header
                  %s1495 = sphi 0, %s1499
                  %p1496 = scmp.ge.s32.totalorder %s1495, 1
                  %s1500 = sphi %s1455, %s1455
                  %s1501 = sphi %s1467, %s1467
                $region62: #{multires_hash_encoding.2} parent=58 // loop_header_branch
                  %1498 = sbr.rel (%p1496) target = $region66
                $region63: #{multires_hash_encoding.2} parent=58 // loop_body
                  %v1502 = vld [vmem:[%s1500] sm:$0xff]
                  %1503 = vst [vmem:[%s1501] sm:$0xff] %v1502
                  %v1504 = vld [vmem:[%s1500 + $0x8] sm:$0xff]
                  %1505 = vst [vmem:[%s1501 + $0x8] sm:$0xff] %v1504
                  %v1506 = vld [vmem:[%s1500 + $0x10] sm:$0xff]
                  %1507 = vst [vmem:[%s1501 + $0x20] sm:$0xff] %v1506
                  %v1508 = vld [vmem:[%s1500 + $0x18] sm:$0xff]
                  %1509 = vst [vmem:[%s1501 + $0x28] sm:$0xff] %v1508
                $region64: #{multires_hash_encoding.2} parent=58 // loop_footer
                  %s1499 = sadd.s32 1, %s1495
                $region65: #{multires_hash_encoding.2} parent=58 // loop_footer_branch
                  %1494 = sbr.rel target = $region61
                $region66: #{multires_hash_encoding.2} parent=58 // loop_exit
                  _
              $region59: #{multires_hash_encoding.2} parent=43 // pred_fallthru
                _
              // Predicated region
              $region67: #{multires_hash_encoding.2} parent=43 // pred_check
                _
              $region68: #{multires_hash_encoding.2} parent=43 // pred_check_branch
                %1511 = sbr.rel target = $region70
              $region69: #{multires_hash_encoding.2} parent=43 // pred_region
                _
              $region70: #{multires_hash_encoding.2} parent=43 // pred_fallthru
                _
            $region44: #{multires_hash_encoding.2} parent=39 // pred_fallthru
              _
            // Predicated region
            $region45: #{multires_hash_encoding.2} parent=39 // pred_check
              _
            $region46: #{multires_hash_encoding.2} parent=39 // pred_check_branch
              %1473 = sbr.rel target = $region48
            $region47: #{multires_hash_encoding.2} parent=39 // pred_region
              %s1475 = ssub.s32 256, 1
              loop: start=0, step=1, limit=1
              $region49: #{multires_hash_encoding.2} parent=47 // loop_pre_header
                _
              $region50: #{multires_hash_encoding.2} parent=47 // loop_header
                %s1477 = sphi 0, %s1481
                %p1478 = scmp.ge.s32.totalorder %s1477, 1
                %s1482 = sphi %s1455, %s1455
                %s1483 = sphi %s1467, %s1467
              $region51: #{multires_hash_encoding.2} parent=47 // loop_header_branch
                %1480 = sbr.rel (%p1478) target = $region55
              $region52: #{multires_hash_encoding.2} parent=47 // loop_body
                %v1484 = vld [vmem:[%s1482] sm:%s1475]
                %1485 = vst [vmem:[%s1483] sm:%s1475] %v1484
                %v1486 = vld [vmem:[%s1482 + $0x8] sm:%s1475]
                %1487 = vst [vmem:[%s1483 + $0x8] sm:%s1475] %v1486
                %v1488 = vld [vmem:[%s1482 + $0x10] sm:%s1475]
                %1489 = vst [vmem:[%s1483 + $0x20] sm:%s1475] %v1488
                %v1490 = vld [vmem:[%s1482 + $0x18] sm:%s1475]
                %1491 = vst [vmem:[%s1483 + $0x28] sm:%s1475] %v1490
              $region53: #{multires_hash_encoding.2} parent=47 // loop_footer
                %s1481 = sadd.s32 1, %s1477
              $region54: #{multires_hash_encoding.2} parent=47 // loop_footer_branch
                %1476 = sbr.rel target = $region50
              $region55: #{multires_hash_encoding.2} parent=47 // loop_exit
                _
            $region48: #{multires_hash_encoding.2} parent=39 // pred_fallthru
              _
          $region40: #{multires_hash_encoding.2} parent=35 // pred_fallthru
            _
          %1512 = vnop
        $region36: #{multires_hash_encoding.2} parent=23 // pred_fallthru
          _
      $region24: #{multires_hash_encoding.2} parent=5 // pred_fallthru
        _
      %p1513 = scmp.le.s32.totalorder 2, %s10
      // Predicated region
      $region71: #{multires_hash_encoding.2} parent=5 // pred_check
        %p1514 = pneg %p1513
      $region72: #{multires_hash_encoding.2} parent=5 // pred_check_branch
        %1516 = sbr.rel (%p1514) target = $region74
      $region73: #{multires_hash_encoding.2} parent=5 // pred_region
        %s1517 = ssub.s32 %s10, 2
        // Predicated region
        $region75: #{multires_hash_encoding.2} parent=73 // pred_check
          %p1518 = pneg %p65
        $region76: #{multires_hash_encoding.2} parent=73 // pred_check_branch
          %1520 = sbr.rel (%p1518) target = $region78
        $region77: #{multires_hash_encoding.2} parent=73 // pred_region
          %p1521 = scmp.lt.s32.totalorder %s16, 1
          %s1522 = scalar_select %p1521, %s16, 1
          %s1523 = smul.addr %s1522, 4
          %s1524 = scalar_lea.vmem %s1, %s1523
        $region78: #{multires_hash_encoding.2} parent=73 // pred_fallthru
          _
        // Predicated region
        $region79: #{multires_hash_encoding.2} parent=73 // pred_check
          %p1525 = pneg %p91
        $region80: #{multires_hash_encoding.2} parent=73 // pred_check_branch
          %1527 = sbr.rel (%p1525) target = $region82
        $region81: #{multires_hash_encoding.2} parent=73 // pred_region
          %p1528 = scmp.lt.s32.totalorder %s16, 1
          %s1529 = scalar_select %p1528, %s16, 1
          %s1530 = smul.addr %s1529, 8
          %s1531 = scalar_lea.vmem %s2, %s1530
        $region82: #{multires_hash_encoding.2} parent=73 // pred_fallthru
          _
        // Predicated region
        $region83: #{multires_hash_encoding.2} parent=73 // pred_check
          %p1532 = pneg %p117
        $region84: #{multires_hash_encoding.2} parent=73 // pred_check_branch
          %1534 = sbr.rel (%p1532) target = $region86
        $region85: #{multires_hash_encoding.2} parent=73 // pred_region
          %s1535 = sand.u32 %s102, 1
          %s1536 = sand.u32 %s102, 1
          %s1537 = smul.addr %s1536, 32
          %s1538 = scalar_lea.vmem [#allocation2], %s1537
        $region86: #{multires_hash_encoding.2} parent=73 // pred_fallthru
          _
      $region74: #{multires_hash_encoding.2} parent=5 // pred_fallthru
        _
    $region6: #{multires_hash_encoding.2} parent=1 // loop_footer
      %s14 = sadd.s32 1, %s10
    $region7: #{multires_hash_encoding.2} parent=1 // loop_footer_branch
      %9 = sbr.rel target = $region3
    $region8: #{multires_hash_encoding.2} parent=1 // loop_exit
      _

// kernel: multires_hash_encoding.3
$region0: #{multires_hash_encoding.3}
  #allocation0 [shape = 'u32[]', space=smem, size = 0x4, offset = 0x4, fixed_abs, tag = 'smem constant byte address 0x4 - core index']
  #allocation1 [shape = 'u32[72,128]{1,0:T(1,128)}', space=vmem, size = 0x9000, scoped, tag = 'internal scratch']
  %s0 = inlined_call_operand.vmem [shape: f32[1,3,2,4,4], index: 0, kind: input, shape index: {}]
  %s1 = inlined_call_operand.vmem [shape: f32[16,4], index: 1, kind: input, shape index: {}]
  %s2 = inlined_call_operand.vmem [shape: f32[4,16], index: 2, kind: input, shape index: {}]
  %s3 = inlined_call_operand.vmem [shape: f32[1,3,2,8,8], index: 3, kind: input, shape index: {}]
  %s4 = inlined_call_operand.vmem [shape: f32[16,8], index: 4, kind: input, shape index: {}]
  %s5 = inlined_call_operand.vmem [shape: f32[8,16], index: 5, kind: input, shape index: {}]
  %s6 = inlined_call_operand.vmem [shape: f32[2,3,2,16,16], index: 6, kind: input, shape index: {}]
  %s7 = inlined_call_operand.hbm [shape: f32[2,12,16,16], index: 7, kind: output, shape index: {}]
  %s8 = sld [smem:[#allocation0]]
  $region190: #{multires_hash_encoding.3} parent=0
    _
  %s10 = ssub.s32 1, %s8
  %s11 = scalar_select 0, %s10, %s8
  $region1: #{multires_hash_encoding.3} parent=0
    #allocation2 [shape = 'u8[12288]{0}', space=vmem, size = 0x3000, scoped, tag = 'input window, operand 0']
    #allocation3 [shape = 'u8[24576]{0}', space=vmem, size = 0x6000, scoped, tag = 'input window, operand 3']
    #allocation4 [shape = 'u8[49152]{0}', space=vmem, size = 0xc000, scoped, tag = 'input window, operand 6']
    #allocation5 [shape = 'u8[49152]{0}', space=vmem, size = 0xc000, scoped, tag = 'output window, operand 0']
    #allocation6 [shape = 's32[2]{0}', space=sflag, size = 0x8, scoped, tag = 'scoped memory for multires_hash_encoding.3']
    %12 = vsyncpa [#allocation6], 0
    %s13 = scalar_lea.sflag [#allocation6], 1
    %14 = vsyncpa %s13, 0
    loop: start=0, step=1, limit=10
    $region2: #{multires_hash_encoding.3} parent=1 // loop_pre_header
      _
    $region3: #{multires_hash_encoding.3} parent=1 // loop_header
      %s16 = sphi 0, %s20
      %p17 = scmp.ge.s32.totalorder %s16, 10
      %s23 = sphi 0, %s35
      %s24 = sphi 0, %s31
      %s25 = sphi 0, %s23
      %s26 = sphi 0, %s24
      %s27 = sphi 0, %s25
      %s28 = sphi 0, %s26
      %s48 = sphi 0, %s50
      %s51 = sphi 0, %s48
      %s52 = sphi 0, %s51
      %s68 = sphi 0, %s52
      %s72 = sphi 0, %s72
      %s74 = sphi 0, %s72
      %s75 = sphi 0, %s74
      %s89 = sphi 0, %s75
      %s93 = sphi 0, %s93
      %s95 = sphi 0, %s93
      %s96 = sphi 0, %s95
      %s110 = sphi 0, %s96
      %s128 = sphi 0, %s130
      %s131 = sphi 0, %s128
      %s132 = sphi 0, %s131
      %s148 = sphi 0, %s132
      %s152 = sphi 0, %s152
      %s154 = sphi 0, %s152
      %s155 = sphi 0, %s154
      %s169 = sphi 0, %s155
      %s173 = sphi 0, %s173
      %s175 = sphi 0, %s173
      %s176 = sphi 0, %s175
      %s190 = sphi 0, %s176
      %s208 = sphi 0, %s210
      %s211 = sphi 0, %s208
      %s212 = sphi 0, %s211
      %s228 = sphi 0, %s212
      %s236 = sphi 0, %s238
      %s239 = sphi 0, %s236
      %s240 = sphi 0, %s239
      %s256 = sphi 0, %s240
    $region4: #{multires_hash_encoding.3} parent=1 // loop_header_branch
      %19 = sbr.rel (%p17) target = $region8
    $region5: #{multires_hash_encoding.3} parent=1 // loop_body
      %s21 = ssub.s32 %s16, 1
      %s22 = ssub.s32 %s16, 2
      %s29 = sadd.s32 1, %s24
      %p30 = scmp.ge.s32.totalorder %s29, 4
      %s31 = scalar_select %p30, 0, %s29
      %s32 = sadd.s32 1, %s23
      %s33 = scalar_select %p30, %s32, %s23
      %p34 = scmp.ge.s32.totalorder %s33, 2
      %s35 = scalar_select %p34, 0, %s33
      %p36 = scmp.gt.s32.totalorder %s24, 0
      %s37 = scalar_select %p36, %s24, 0
      %p38 = scmp.lt.s32.totalorder %s37, 0
      %s39 = scalar_select %p38, %s37, 0
      %p40 = scmp.gt.s32.totalorder %s31, 0
      %s41 = scalar_select %p40, %s31, 0
      %p42 = scmp.lt.s32.totalorder %s41, 0
      %s43 = scalar_select %p42, %s41, 0
      %s44 = ssub.s32 %s39, %s43
      %s45 = ssub.s32 %s23, %s35
      %s46 = sor.u32 %s44, %s45
      %p47 = scmp.eq.s32.totalorder %s46, 0
      %s49 = sadd.s32 %s48, 1
      %s50 = scalar_select %p47, %s48, %s49
      %p53 = pneg %p47
      %p54 = scmp.eq.s32.totalorder %s16, 7
      %p55 = por %p53, %p54
      %p56 = scmp.ne.s32.totalorder %s48, %s51
      %p57 = scmp.eq.s32.totalorder %s16, 0
      %p58 = por %p56, %p57
      %p59 = scmp.ne.s32.totalorder %s48, %s51
      %p60 = scmp.eq.s32.totalorder %s21, 7
      %p61 = por %p59, %p60
      %p62 = scmp.ne.s32.totalorder %s51, %s52
      %p63 = scmp.eq.s32.totalorder %s21, 0
      %p64 = por %p62, %p63
      %p65 = scmp.ne.s32.totalorder %s51, %s52
      %p66 = scmp.eq.s32.totalorder %s22, 7
      %p67 = por %p65, %p66
      %p69 = scmp.ne.s32.totalorder %s52, %s68
      %p70 = scmp.eq.s32.totalorder %s22, 0
      %p71 = por %p69, %p70
      %s73 = sadd.s32 %s72, 1
      %p76 = scmp.eq.s32.totalorder %s16, 7
      %p77 = scmp.ne.s32.totalorder %s72, %s74
      %p78 = scmp.eq.s32.totalorder %s16, 0
      %p79 = por %p77, %p78
      %p80 = scmp.ne.s32.totalorder %s72, %s74
      %p81 = scmp.eq.s32.totalorder %s21, 7
      %p82 = por %p80, %p81
      %p83 = scmp.ne.s32.totalorder %s74, %s75
      %p84 = scmp.eq.s32.totalorder %s21, 0
      %p85 = por %p83, %p84
      %p86 = scmp.ne.s32.totalorder %s74, %s75
      %p87 = scmp.eq.s32.totalorder %s22, 7
      %p88 = por %p86, %p87
      %p90 = scmp.ne.s32.totalorder %s75, %s89
      %p91 = scmp.eq.s32.totalorder %s22, 0
      %p92 = por %p90, %p91
      %s94 = sadd.s32 %s93, 1
      %p97 = scmp.eq.s32.totalorder %s16, 7
      %p98 = scmp.ne.s32.totalorder %s93, %s95
      %p99 = scmp.eq.s32.totalorder %s16, 0
      %p100 = por %p98, %p99
      %p101 = scmp.ne.s32.totalorder %s93, %s95
      %p102 = scmp.eq.s32.totalorder %s21, 7
      %p103 = por %p101, %p102
      %p104 = scmp.ne.s32.totalorder %s95, %s96
      %p105 = scmp.eq.s32.totalorder %s21, 0
      %p106 = por %p104, %p105
      %p107 = scmp.ne.s32.totalorder %s95, %s96
      %p108 = scmp.eq.s32.totalorder %s22, 7
      %p109 = por %p107, %p108
      %p111 = scmp.ne.s32.totalorder %s96, %s110
      %p112 = scmp.eq.s32.totalorder %s22, 0
      %p113 = por %p111, %p112
      %s114 = ssub.s32 %s24, 1
      %p115 = scmp.gt.s32.totalorder %s114, 0
      %s116 = scalar_select %p115, %s114, 0
      %p117 = scmp.lt.s32.totalorder %s116, 0
      %s118 = scalar_select %p117, %s116, 0
      %s119 = ssub.s32 %s31, 1
      %p120 = scmp.gt.s32.totalorder %s119, 0
      %s121 = scalar_select %p120, %s119, 0
      %p122 = scmp.lt.s32.totalorder %s121, 0
      %s123 = scalar_select %p122, %s121, 0
      %s124 = ssub.s32 %s118, %s123
      %s125 = ssub.s32 %s23, %s35
      %s126 = sor.u32 %s124, %s125
      %p127 = scmp.eq.s32.totalorder %s126, 0
      %s129 = sadd.s32 %s128, 1
      %s130 = scalar_select %p127, %s128, %s129
      %p133 = pneg %p127
      %p134 = scmp.eq.s32.totalorder %s16, 7
      %p135 = por %p133, %p134
      %p136 = scmp.ne.s32.totalorder %s128, %s131
      %p137 = scmp.eq.s32.totalorder %s16, 0
      %p138 = por %p136, %p137
      %p139 = scmp.ne.s32.totalorder %s128, %s131
      %p140 = scmp.eq.s32.totalorder %s21, 7
      %p141 = por %p139, %p140
      %p142 = scmp.ne.s32.totalorder %s131, %s132
      %p143 = scmp.eq.s32.totalorder %s21, 0
      %p144 = por %p142, %p143
      %p145 = scmp.ne.s32.totalorder %s131, %s132
      %p146 = scmp.eq.s32.totalorder %s22, 7
      %p147 = por %p145, %p146
      %p149 = scmp.ne.s32.totalorder %s132, %s148
      %p150 = scmp.eq.s32.totalorder %s22, 0
      %p151 = por %p149, %p150
      %s153 = sadd.s32 %s152, 1
      %p156 = scmp.eq.s32.totalorder %s16, 7
      %p157 = scmp.ne.s32.totalorder %s152, %s154
      %p158 = scmp.eq.s32.totalorder %s16, 0
      %p159 = por %p157, %p158
      %p160 = scmp.ne.s32.totalorder %s152, %s154
      %p161 = scmp.eq.s32.totalorder %s21, 7
      %p162 = por %p160, %p161
      %p163 = scmp.ne.s32.totalorder %s154, %s155
      %p164 = scmp.eq.s32.totalorder %s21, 0
      %p165 = por %p163, %p164
      %p166 = scmp.ne.s32.totalorder %s154, %s155
      %p167 = scmp.eq.s32.totalorder %s22, 7
      %p168 = por %p166, %p167
      %p170 = scmp.ne.s32.totalorder %s155, %s169
      %p171 = scmp.eq.s32.totalorder %s22, 0
      %p172 = por %p170, %p171
      %s174 = sadd.s32 %s173, 1
      %p177 = scmp.eq.s32.totalorder %s16, 7
      %p178 = scmp.ne.s32.totalorder %s173, %s175
      %p179 = scmp.eq.s32.totalorder %s16, 0
      %p180 = por %p178, %p179
      %p181 = scmp.ne.s32.totalorder %s173, %s175
      %p182 = scmp.eq.s32.totalorder %s21, 7
      %p183 = por %p181, %p182
      %p184 = scmp.ne.s32.totalorder %s175, %s176
      %p185 = scmp.eq.s32.totalorder %s21, 0
      %p186 = por %p184, %p185
      %p187 = scmp.ne.s32.totalorder %s175, %s176
      %p188 = scmp.eq.s32.totalorder %s22, 7
      %p189 = por %p187, %p188
      %p191 = scmp.ne.s32.totalorder %s176, %s190
      %p192 = scmp.eq.s32.totalorder %s22, 0
      %p193 = por %p191, %p192
      %s194 = ssub.s32 %s24, 2
      %p195 = scmp.gt.s32.totalorder %s194, 0
      %s196 = scalar_select %p195, %s194, 0
      %p197 = scmp.lt.s32.totalorder %s196, 1
      %s198 = scalar_select %p197, %s196, 1
      %s199 = ssub.s32 %s31, 2
      %p200 = scmp.gt.s32.totalorder %s199, 0
      %s201 = scalar_select %p200, %s199, 0
      %p202 = scmp.lt.s32.totalorder %s201, 1
      %s203 = scalar_select %p202, %s201, 1
      %s204 = ssub.s32 %s198, %s203
      %s205 = ssub.s32 %s23, %s35
      %s206 = sor.u32 %s204, %s205
      %p207 = scmp.eq.s32.totalorder %s206, 0
      %s209 = sadd.s32 %s208, 1
      %s210 = scalar_select %p207, %s208, %s209
      %p213 = pneg %p207
      %p214 = scmp.eq.s32.totalorder %s16, 7
      %p215 = por %p213, %p214
      %p216 = scmp.ne.s32.totalorder %s208, %s211
      %p217 = scmp.eq.s32.totalorder %s16, 0
      %p218 = por %p216, %p217
      %p219 = scmp.ne.s32.totalorder %s208, %s211
      %p220 = scmp.eq.s32.totalorder %s21, 7
      %p221 = por %p219, %p220
      %p222 = scmp.ne.s32.totalorder %s211, %s212
      %p223 = scmp.eq.s32.totalorder %s21, 0
      %p224 = por %p222, %p223
      %p225 = scmp.ne.s32.totalorder %s211, %s212
      %p226 = scmp.eq.s32.totalorder %s22, 7
      %p227 = por %p225, %p226
      %p229 = scmp.ne.s32.totalorder %s212, %s228
      %p230 = scmp.eq.s32.totalorder %s22, 0
      %p231 = por %p229, %p230
      %s232 = ssub.s32 %s23, %s35
      %s233 = ssub.s32 %s24, %s31
      %s234 = sor.u32 %s232, %s233
      %p235 = scmp.eq.s32.totalorder %s234, 0
      %s237 = sadd.s32 %s236, 1
      %s238 = scalar_select %p235, %s236, %s237
      %p241 = pneg %p235
      %p242 = scmp.eq.s32.totalorder %s16, 7
      %p243 = por %p241, %p242
      %p244 = scmp.ne.s32.totalorder %s236, %s239
      %p245 = scmp.eq.s32.totalorder %s16, 0
      %p246 = por %p244, %p245
      %p247 = scmp.ne.s32.totalorder %s236, %s239
      %p248 = scmp.eq.s32.totalorder %s21, 7
      %p249 = por %p247, %p248
      %p250 = scmp.ne.s32.totalorder %s239, %s240
      %p251 = scmp.eq.s32.totalorder %s21, 0
      %p252 = por %p250, %p251
      %p253 = scmp.ne.s32.totalorder %s239, %s240
      %p254 = scmp.eq.s32.totalorder %s22, 7
      %p255 = por %p253, %p254
      %p257 = scmp.ne.s32.totalorder %s240, %s256
      %p258 = scmp.eq.s32.totalorder %s22, 0
      %p259 = por %p257, %p258
      %p260 = scmp.le.s32.totalorder 1, %s16
      %p261 = scmp.lt.s32.totalorder %s16, 9
      %p262 = pnand %p260, %p261
      %p263 = pneg %p262
      // Predicated region
      $region9: #{multires_hash_encoding.3} parent=5 // pred_check
        _
      $region10: #{multires_hash_encoding.3} parent=5 // pred_check_branch
        %265 = sbr.rel (%p262) target = $region12
      $region11: #{multires_hash_encoding.3} parent=5 // pred_region
        %s266 = ssub.s32 %s16, 1
        // Predicated region
        $region13: #{multires_hash_encoding.3} parent=11 // pred_check
          %p267 = pneg %p85
        $region14: #{multires_hash_encoding.3} parent=11 // pred_check_branch
          %269 = sbr.rel (%p267) target = $region16
        $region15: #{multires_hash_encoding.3} parent=11 // pred_region
          _
        $region16: #{multires_hash_encoding.3} parent=11 // pred_fallthru
          _
        // Predicated region
        $region17: #{multires_hash_encoding.3} parent=11 // pred_check
          %p270 = pneg %p106
        $region18: #{multires_hash_encoding.3} parent=11 // pred_check_branch
          %272 = sbr.rel (%p270) target = $region20
        $region19: #{multires_hash_encoding.3} parent=11 // pred_region
          _
        $region20: #{multires_hash_encoding.3} parent=11 // pred_fallthru
          _
        // Predicated region
        $region21: #{multires_hash_encoding.3} parent=11 // pred_check
          %p273 = pneg %p165
        $region22: #{multires_hash_encoding.3} parent=11 // pred_check_branch
          %275 = sbr.rel (%p273) target = $region24
        $region23: #{multires_hash_encoding.3} parent=11 // pred_region
          _
        $region24: #{multires_hash_encoding.3} parent=11 // pred_fallthru
          _
        // Predicated region
        $region25: #{multires_hash_encoding.3} parent=11 // pred_check
          %p276 = pneg %p186
        $region26: #{multires_hash_encoding.3} parent=11 // pred_check_branch
          %278 = sbr.rel (%p276) target = $region28
        $region27: #{multires_hash_encoding.3} parent=11 // pred_region
          _
        $region28: #{multires_hash_encoding.3} parent=11 // pred_fallthru
          _
      $region12: #{multires_hash_encoding.3} parent=5 // pred_fallthru
        _
      %p279 = scmp.lt.s32.totalorder %s16, 8
      // Predicated region
      $region29: #{multires_hash_encoding.3} parent=5 // pred_check
        %p280 = pneg %p279
      $region30: #{multires_hash_encoding.3} parent=5 // pred_check_branch
        %282 = sbr.rel (%p280) target = $region32
      $region31: #{multires_hash_encoding.3} parent=5 // pred_region
        // Predicated region
        $region33: #{multires_hash_encoding.3} parent=31 // pred_check
          %p283 = pneg %p58
        $region34: #{multires_hash_encoding.3} parent=31 // pred_check_branch
          %285 = sbr.rel (%p283) target = $region36
        $region35: #{multires_hash_encoding.3} parent=31 // pred_region
          %s286 = sand.u32 %s48, 1
          %s287 = sand.u32 %s48, 1
          %s288 = smul.addr %s287, 12
          %s289 = scalar_lea.vmem [#allocation2], %s288
          %p290 = scmp.gt.s32.totalorder %s24, 0
          %s291 = scalar_select %p290, %s24, 0
          %p292 = scmp.lt.s32.totalorder %s291, 0
          %s293 = scalar_select %p292, %s291, 0
          %s294 = smul.addr %s293, 6
          %s295 = sadd.s32 %s23, %s294
          %s296 = smul.addr %s295, 4
          %s297 = scalar_lea.vmem %s0, %s296
          // Predicated region
          $region37: #{multires_hash_encoding.3} parent=35 // pred_check
            _
          $region38: #{multires_hash_encoding.3} parent=35 // pred_check_branch
            %299 = sbr.rel (0) target = $region40
          $region39: #{multires_hash_encoding.3} parent=35 // pred_region
            // Predicated region
            $region41: #{multires_hash_encoding.3} parent=39 // pred_check
              _
            $region42: #{multires_hash_encoding.3} parent=39 // pred_check_branch
              %301 = sbr.rel target = $region44
            $region43: #{multires_hash_encoding.3} parent=39 // pred_region
              // Predicated region
              $region56: #{multires_hash_encoding.3} parent=43 // pred_check
                _
              $region57: #{multires_hash_encoding.3} parent=43 // pred_check_branch
                %321 = sbr.rel (0) target = $region59
              $region58: #{multires_hash_encoding.3} parent=43 // pred_region
                loop: start=0, step=1, limit=1
                $region60: #{multires_hash_encoding.3} parent=58 // loop_pre_header
                  _
                $region61: #{multires_hash_encoding.3} parent=58 // loop_header
                  %s323 = sphi 0, %s327
                  %p324 = scmp.ge.s32.totalorder %s323, 1
                  %s328 = sphi %s297, %s297
                  %s329 = sphi %s289, %s289
                $region62: #{multires_hash_encoding.3} parent=58 // loop_header_branch
                  %326 = sbr.rel (%p324) target = $region66
                $region63: #{multires_hash_encoding.3} parent=58 // loop_body
                  _
                $region64: #{multires_hash_encoding.3} parent=58 // loop_footer
                  %s327 = sadd.s32 1, %s323
                $region65: #{multires_hash_encoding.3} parent=58 // loop_footer_branch
                  %322 = sbr.rel target = $region61
                $region66: #{multires_hash_encoding.3} parent=58 // loop_exit
                  _
                %s331 = ssub.s32 16, 1
                loop: start=0, step=1, limit=1
                $region67: #{multires_hash_encoding.3} parent=58 // loop_pre_header
                  _
                $region68: #{multires_hash_encoding.3} parent=58 // loop_header
                  %s333 = sphi 0, %s337
                  %p334 = scmp.ge.s32.totalorder %s333, 1
                  %s338 = sphi %s297, %s297
                  %s339 = sphi %s289, %s289
                $region69: #{multires_hash_encoding.3} parent=58 // loop_header_branch
                  %336 = sbr.rel (%p334) target = $region73
                $region70: #{multires_hash_encoding.3} parent=58 // loop_body
                  %v340 = vld [vmem:[%s338] sm:%s331]
                  %341 = vst [vmem:[%s339] sm:%s331] %v340
                  %v342 = vld [vmem:[%s338 + $0x8] sm:%s331]
                  %343 = vst [vmem:[%s339 + $0x4] sm:%s331] %v342
                  %v344 = vld [vmem:[%s338 + $0x10] sm:%s331]
                  %345 = vst [vmem:[%s339 + $0x8] sm:%s331] %v344
                $region71: #{multires_hash_encoding.3} parent=58 // loop_footer
                  %s337 = sadd.s32 1, %s333
                $region72: #{multires_hash_encoding.3} parent=58 // loop_footer_branch
                  %332 = sbr.rel target = $region68
                $region73: #{multires_hash_encoding.3} parent=58 // loop_exit
                  _
              $region59: #{multires_hash_encoding.3} parent=43 // pred_fallthru
                _
            $region44: #{multires_hash_encoding.3} parent=39 // pred_fallthru
              _
            // Predicated region
            $region45: #{multires_hash_encoding.3} parent=39 // pred_check
              _
            $region46: #{multires_hash_encoding.3} parent=39 // pred_check_branch
              %303 = sbr.rel (0) target = $region48
            $region47: #{multires_hash_encoding.3} parent=39 // pred_region
              %s305 = ssub.s32 16, 1
              loop: start=0, step=1, limit=1
              $region49: #{multires_hash_encoding.3} parent=47 // loop_pre_header
                _
              $region50: #{multires_hash_encoding.3} parent=47 // loop_header
                %s307 = sphi 0, %s311
                %p308 = scmp.ge.s32.totalorder %s307, 1
                %s312 = sphi %s297, %s297
                %s313 = sphi %s289, %s289
              $region51: #{multires_hash_encoding.3} parent=47 // loop_header_branch
                %310 = sbr.rel (%p308) target = $region55
              $region52: #{multires_hash_encoding.3} parent=47 // loop_body
                %v314 = vld [vmem:[%s312] sm:%s305]
                %315 = vst [vmem:[%s313] sm:%s305] %v314
                %v316 = vld [vmem:[%s312 + $0x8] sm:%s305]
                %317 = vst [vmem:[%s313 + $0x4] sm:%s305] %v316
                %v318 = vld [vmem:[%s312 + $0x10] sm:%s305]
                %319 = vst [vmem:[%s313 + $0x8] sm:%s305] %v318
              $region53: #{multires_hash_encoding.3} parent=47 // loop_footer
                %s311 = sadd.s32 1, %s307
              $region54: #{multires_hash_encoding.3} parent=47 // loop_footer_branch
                %306 = sbr.rel target = $region50
              $region55: #{multires_hash_encoding.3} parent=47 // loop_exit
                _
            $region48: #{multires_hash_encoding.3} parent=39 // pred_fallthru
              _
          $region40: #{multires_hash_encoding.3} parent=35 // pred_fallthru
            _
          %346 = vnop
        $region36: #{multires_hash_encoding.3} parent=31 // pred_fallthru
          _
        // Predicated region
        $region74: #{multires_hash_encoding.3} parent=31 // pred_check
          %p347 = pneg %p138
        $region75: #{multires_hash_encoding.3} parent=31 // pred_check_branch
          %349 = sbr.rel (%p347) target = $region77
        $region76: #{multires_hash_encoding.3} parent=31 // pred_region
          %s350 = sand.u32 %s128, 1
          %s351 = sand.u32 %s128, 1
          %s352 = smul.addr %s351, 24
          %s353 = scalar_lea.vmem [#allocation3], %s352
          %s354 = ssub.s32 %s24, 1
          %p355 = scmp.gt.s32.totalorder %s354, 0
          %s356 = scalar_select %p355, %s354, 0
          %p357 = scmp.lt.s32.totalorder %s356, 0
          %s358 = scalar_select %p357, %s356, 0
          %s359 = smul.addr %s358, 6
          %s360 = sadd.s32 %s23, %s359
          %s361 = smul.addr %s360, 8
          %s362 = scalar_lea.vmem %s3, %s361
          // Predicated region
          $region78: #{multires_hash_encoding.3} parent=76 // pred_check
            _
          $region79: #{multires_hash_encoding.3} parent=76 // pred_check_branch
            %364 = sbr.rel (0) target = $region81
          $region80: #{multires_hash_encoding.3} parent=76 // pred_region
            // Predicated region
            $region82: #{multires_hash_encoding.3} parent=80 // pred_check
              _
            $region83: #{multires_hash_encoding.3} parent=80 // pred_check_branch
              %366 = sbr.rel (0) target = $region85
            $region84: #{multires_hash_encoding.3} parent=80 // pred_region
              // Predicated region
              $region97: #{multires_hash_encoding.3} parent=84 // pred_check
                _
              $region98: #{multires_hash_encoding.3} parent=84 // pred_check_branch
                %386 = sbr.rel (0) target = $region100
              $region99: #{multires_hash_encoding.3} parent=84 // pred_region
                loop: start=0, step=1, limit=1
                $region101: #{multires_hash_encoding.3} parent=99 // loop_pre_header
                  _
                $region102: #{multires_hash_encoding.3} parent=99 // loop_header
                  %s388 = sphi 0, %s392
                  %p389 = scmp.ge.s32.totalorder %s388, 1
                  %s393 = sphi %s362, %s362
                  %s394 = sphi %s353, %s353
                $region103: #{multires_hash_encoding.3} parent=99 // loop_header_branch
                  %391 = sbr.rel (%p389) target = $region107
                $region104: #{multires_hash_encoding.3} parent=99 // loop_body
                  %v395 = vld [vmem:[%s393] sm:$0xff]
                  %396 = vst [vmem:[%s394] sm:$0xff] %v395
                  %v397 = vld [vmem:[%s393 + $0x10] sm:$0xff]
                  %398 = vst [vmem:[%s394 + $0x8] sm:$0xff] %v397
                  %v399 = vld [vmem:[%s393 + $0x20] sm:$0xff]
                  %400 = vst [vmem:[%s394 + $0x10] sm:$0xff] %v399
                $region105: #{multires_hash_encoding.3} parent=99 // loop_footer
                  %s392 = sadd.s32 1, %s388
                $region106: #{multires_hash_encoding.3} parent=99 // loop_footer_branch
                  %387 = sbr.rel target = $region102
                $region107: #{multires_hash_encoding.3} parent=99 // loop_exit
                  _
              $region100: #{multires_hash_encoding.3} parent=84 // pred_fallthru
                _
              // Predicated region
              $region108: #{multires_hash_encoding.3} parent=84 // pred_check
                _
              $region109: #{multires_hash_encoding.3} parent=84 // pred_check_branch
                %402 = sbr.rel target = $region111
              $region110: #{multires_hash_encoding.3} parent=84 // pred_region
                _
              $region111: #{multires_hash_encoding.3} parent=84 // pred_fallthru
                _
            $region85: #{multires_hash_encoding.3} parent=80 // pred_fallthru
              _
            // Predicated region
            $region86: #{multires_hash_encoding.3} parent=80 // pred_check
              _
            $region87: #{multires_hash_encoding.3} parent=80 // pred_check_branch
              %368 = sbr.rel target = $region89
            $region88: #{multires_hash_encoding.3} parent=80 // pred_region
              %s370 = ssub.s32 256, 1
              loop: start=0, step=1, limit=1
              $region90: #{multires_hash_encoding.3} parent=88 // loop_pre_header
                _
              $region91: #{multires_hash_encoding.3} parent=88 // loop_header
                %s372 = sphi 0, %s376
                %p373 = scmp.ge.s32.totalorder %s372, 1
                %s377 = sphi %s362, %s362
                %s378 = sphi %s353, %s353
              $region92: #{multires_hash_encoding.3} parent=88 // loop_header_branch
                %375 = sbr.rel (%p373) target = $region96
              $region93: #{multires_hash_encoding.3} parent=88 // loop_body
                %v379 = vld [vmem:[%s377] sm:%s370]
                %380 = vst [vmem:[%s378] sm:%s370] %v379
                %v381 = vld [vmem:[%s377 + $0x10] sm:%s370]
                %382 = vst [vmem:[%s378 + $0x8] sm:%s370] %v381
                %v383 = vld [vmem:[%s377 + $0x20] sm:%s370]
                %384 = vst [vmem:[%s378 + $0x10] sm:%s370] %v383
              $region94: #{multires_hash_encoding.3} parent=88 // loop_footer
                %s376 = sadd.s32 1, %s372
              $region95: #{multires_hash_encoding.3} parent=88 // loop_footer_branch
                %371 = sbr.rel target = $region91
              $region96: #{multires_hash_encoding.3} parent=88 // loop_exit
                _
            $region89: #{multires_hash_encoding.3} parent=80 // pred_fallthru
              _
          $region81: #{multires_hash_encoding.3} parent=76 // pred_fallthru
            _
          %403 = vnop
        $region77: #{multires_hash_encoding.3} parent=31 // pred_fallthru
          _
        // Predicated region
        $region112: #{multires_hash_encoding.3} parent=31 // pred_check
          %p404 = pneg %p218
        $region113: #{multires_hash_encoding.3} parent=31 // pred_check_branch
          %406 = sbr.rel (%p404) target = $region115
        $region114: #{multires_hash_encoding.3} parent=31 // pred_region
          %s407 = sand.u32 %s208, 1
          %s408 = sand.u32 %s208, 1
          %s409 = smul.addr %s408, 48
          %s410 = scalar_lea.vmem [#allocation4], %s409
          %s411 = ssub.s32 %s24, 2
          %p412 = scmp.gt.s32.totalorder %s411, 0
          %s413 = scalar_select %p412, %s411, 0
          %p414 = scmp.lt.s32.totalorder %s413, 1
          %s415 = scalar_select %p414, %s413, 1
          %s416 = smul.addr %s23, 2
          %s417 = smul.addr %s415, 12
          %s418 = sadd.s32 %s416, %s417
          %s419 = smul.addr %s418, 8
          %s420 = scalar_lea.vmem %s6, %s419
          // Predicated region
          $region116: #{multires_hash_encoding.3} parent=114 // pred_check
            _
          $region117: #{multires_hash_encoding.3} parent=114 // pred_check_branch
            %422 = sbr.rel (0) target = $region119
          $region118: #{multires_hash_encoding.3} parent=114 // pred_region
            // Predicated region
            $region120: #{multires_hash_encoding.3} parent=118 // pred_check
              _
            $region121: #{multires_hash_encoding.3} parent=118 // pred_check_branch
              %424 = sbr.rel (0) target = $region123
            $region122: #{multires_hash_encoding.3} parent=118 // pred_region
              // Predicated region
              $region135: #{multires_hash_encoding.3} parent=122 // pred_check
                _
              $region136: #{multires_hash_encoding.3} parent=122 // pred_check_branch
                %450 = sbr.rel (0) target = $region138
              $region137: #{multires_hash_encoding.3} parent=122 // pred_region
                loop: start=0, step=1, limit=1
                $region139: #{multires_hash_encoding.3} parent=137 // loop_pre_header
                  _
                $region140: #{multires_hash_encoding.3} parent=137 // loop_header
                  %s452 = sphi 0, %s456
                  %p453 = scmp.ge.s32.totalorder %s452, 1
                  %s457 = sphi %s420, %s420
                  %s458 = sphi %s410, %s410
                $region141: #{multires_hash_encoding.3} parent=137 // loop_header_branch
                  %455 = sbr.rel (%p453) target = $region145
                $region142: #{multires_hash_encoding.3} parent=137 // loop_body
                  %v459 = vld [vmem:[%s457] sm:$0xff]
                  %460 = vst [vmem:[%s458] sm:$0xff] %v459
                  %v461 = vld [vmem:[%s457 + $0x8] sm:$0xff]
                  %462 = vst [vmem:[%s458 + $0x8] sm:$0xff] %v461
                  %v463 = vld [vmem:[%s457 + $0x20] sm:$0xff]
                  %464 = vst [vmem:[%s458 + $0x10] sm:$0xff] %v463
                  %v465 = vld [vmem:[%s457 + $0x28] sm:$0xff]
                  %466 = vst [vmem:[%s458 + $0x18] sm:$0xff] %v465
                  %v467 = vld [vmem:[%s457 + $0x40] sm:$0xff]
                  %468 = vst [vmem:[%s458 + $0x20] sm:$0xff] %v467
                  %v469 = vld [vmem:[%s457 + $0x48] sm:$0xff]
                  %470 = vst [vmem:[%s458 + $0x28] sm:$0xff] %v469
                $region143: #{multires_hash_encoding.3} parent=137 // loop_footer
                  %s456 = sadd.s32 1, %s452
                $region144: #{multires_hash_encoding.3} parent=137 // loop_footer_branch
                  %451 = sbr.rel target = $region140
                $region145: #{multires_hash_encoding.3} parent=137 // loop_exit
                  _
              $region138: #{multires_hash_encoding.3} parent=122 // pred_fallthru
                _
              // Predicated region
              $region146: #{multires_hash_encoding.3} parent=122 // pred_check
                _
              $region147: #{multires_hash_encoding.3} parent=122 // pred_check_branch
                %472 = sbr.rel target = $region149
              $region148: #{multires_hash_encoding.3} parent=122 // pred_region
                _
              $region149: #{multires_hash_encoding.3} parent=122 // pred_fallthru
                _
            $region123: #{multires_hash_encoding.3} parent=118 // pred_fallthru
              _
            // Predicated region
            $region124: #{multires_hash_encoding.3} parent=118 // pred_check
              _
            $region125: #{multires_hash_encoding.3} parent=118 // pred_check_branch
              %426 = sbr.rel target = $region127
            $region126: #{multires_hash_encoding.3} parent=118 // pred_region
              %s428 = ssub.s32 256, 1
              loop: start=0, step=1, limit=1
              $region128: #{multires_hash_encoding.3} parent=126 // loop_pre_header
                _
              $region129: #{multires_hash_encoding.3} parent=126 // loop_header
                %s430 = sphi 0, %s434
                %p431 = scmp.ge.s32.totalorder %s430, 1
                %s435 = sphi %s420, %s420
                %s436 = sphi %s410, %s410
              $region130: #{multires_hash_encoding.3} parent=126 // loop_header_branch
                %433 = sbr.rel (%p431) target = $region134
              $region131: #{multires_hash_encoding.3} parent=126 // loop_body
                %v437 = vld [vmem:[%s435] sm:%s428]
                %438 = vst [vmem:[%s436] sm:%s428] %v437
                %v439 = vld [vmem:[%s435 + $0x8] sm:%s428]
                %440 = vst [vmem:[%s436 + $0x8] sm:%s428] %v439
                %v441 = vld [vmem:[%s435 + $0x20] sm:%s428]
                %442 = vst [vmem:[%s436 + $0x10] sm:%s428] %v441
                %v443 = vld [vmem:[%s435 + $0x28] sm:%s428]
                %444 = vst [vmem:[%s436 + $0x18] sm:%s428] %v443
                %v445 = vld [vmem:[%s435 + $0x40] sm:%s428]
                %446 = vst [vmem:[%s436 + $0x20] sm:%s428] %v445
                %v447 = vld [vmem:[%s435 + $0x48] sm:%s428]
                %448 = vst [vmem:[%s436 + $0x28] sm:%s428] %v447
              $region132: #{multires_hash_encoding.3} parent=126 // loop_footer
                %s434 = sadd.s32 1, %s430
              $region133: #{multires_hash_encoding.3} parent=126 // loop_footer_branch
                %429 = sbr.rel target = $region129
              $region134: #{multires_hash_encoding.3} parent=126 // loop_exit
                _
            $region127: #{multires_hash_encoding.3} parent=118 // pred_fallthru
              _
          $region119: #{multires_hash_encoding.3} parent=114 // pred_fallthru
            _
          %473 = vnop
        $region115: #{multires_hash_encoding.3} parent=31 // pred_fallthru
          _
      $region32: #{multires_hash_encoding.3} parent=5 // pred_fallthru
        _
      %p474 = scmp.le.s32.totalorder 1, %s16
      %p475 = scmp.lt.s32.totalorder %s16, 9
      %p476 = pnand %p474, %p475
      %p477 = pneg %p476
      // Predicated region
      $region150: #{multires_hash_encoding.3} parent=5 // pred_check
        _
      $region151: #{multires_hash_encoding.3} parent=5 // pred_check_branch
        %479 = sbr.rel (%p476) target = $region153
      $region152: #{multires_hash_encoding.3} parent=5 // pred_region
        %s480 = ssub.s32 %s16, 1
        %s481 = sand.u32 %s51, 1
        %s482 = sand.u32 %s51, 1
        %s483 = smul.addr %s482, 12
        %s484 = scalar_lea.vmem [#allocation2], %s483
        // Predicated region
        $region154: #{multires_hash_encoding.3} parent=152 // pred_check
          %p485 = pneg %p64
        $region155: #{multires_hash_encoding.3} parent=152 // pred_check_branch
          %487 = sbr.rel (%p485) target = $region157
        $region156: #{multires_hash_encoding.3} parent=152 // pred_region
          _
        $region157: #{multires_hash_encoding.3} parent=152 // pred_fallthru
          _
        %s488 = sand.u32 %s131, 1
        %s489 = sand.u32 %s131, 1
        %s490 = smul.addr %s489, 24
        %s491 = scalar_lea.vmem [#allocation3], %s490
        // Predicated region
        $region158: #{multires_hash_encoding.3} parent=152 // pred_check
          %p492 = pneg %p144
        $region159: #{multires_hash_encoding.3} parent=152 // pred_check_branch
          %494 = sbr.rel (%p492) target = $region161
        $region160: #{multires_hash_encoding.3} parent=152 // pred_region
          _
        $region161: #{multires_hash_encoding.3} parent=152 // pred_fallthru
          _
        %s495 = sand.u32 %s211, 1
        %s496 = sand.u32 %s211, 1
        %s497 = smul.addr %s496, 48
        %s498 = scalar_lea.vmem [#allocation4], %s497
        // Predicated region
        $region162: #{multires_hash_encoding.3} parent=152 // pred_check
          %p499 = pneg %p224
        $region163: #{multires_hash_encoding.3} parent=152 // pred_check_branch
          %501 = sbr.rel (%p499) target = $region165
        $region164: #{multires_hash_encoding.3} parent=152 // pred_region
          _
        $region165: #{multires_hash_encoding.3} parent=152 // pred_fallthru
          _
        %s502 = sand.u32 %s51, 1
        %s503 = sand.u32 %s51, 1
        %s504 = smul.addr %s503, 12
        %s505 = scalar_lea.vmem [#allocation2], %s504
        %p506 = pneg %p64
        %p507 = pneg %p61
        %p508 = pneg %p85
        %p509 = pneg %p82
        %p510 = pneg %p106
        %p511 = pneg %p103
        %s512 = sand.u32 %s131, 1
        %s513 = sand.u32 %s131, 1
        %s514 = smul.addr %s513, 24
        %s515 = scalar_lea.vmem [#allocation3], %s514
        %p516 = pneg %p144
        %p517 = pneg %p141
        %p518 = pneg %p165
        %p519 = pneg %p162
        %p520 = pneg %p186
        %p521 = pneg %p183
        %s522 = sand.u32 %s211, 1
        %s523 = sand.u32 %s211, 1
        %s524 = smul.addr %s523, 48
        %s525 = scalar_lea.vmem [#allocation4], %s524
        %p526 = pneg %p224
        %p527 = pneg %p221
        %p528 = pneg %p252
        %p529 = pneg %p249
        %s530 = sand.u32 %s239, 1
        %s531 = scalar_lea.sflag [#allocation6], %s530
        %s532 = sand.u32 %s239, 1
        %s533 = smul.addr %s532, 48
        %s534 = scalar_lea.vmem [#allocation5], %s533
        %p535 = scmp.gt.s32.totalorder %s26, 0
        %s536 = scalar_select %p535, %s26, 0
        %p537 = scmp.lt.s32.totalorder %s536, 0
        %s538 = scalar_select %p537, %s536, 0
        %s539 = ssub.s32 %s26, 1
        %p540 = scmp.gt.s32.totalorder %s539, 0
        %s541 = scalar_select %p540, %s539, 0
        %p542 = scmp.lt.s32.totalorder %s541, 0
        %s543 = scalar_select %p542, %s541, 0
        %s544 = ssub.s32 %s26, 2
        %p545 = scmp.gt.s32.totalorder %s544, 0
        %s546 = scalar_select %p545, %s544, 0
        %p547 = scmp.lt.s32.totalorder %s546, 1
        %s548 = scalar_select %p547, %s546, 1
        %s549 = smul.u32 3, %s26
        %p550 = scmp.ge.s32.totalorder %s26, 0
        %p551 = scmp.lt.s32.totalorder %s26, 1
        %p552 = pnand %p550, %p551
        %p553 = pneg %p552
        // Predicated region
        $region166: #{multires_hash_encoding.3} parent=152 // pred_check
          _
        $region167: #{multires_hash_encoding.3} parent=152 // pred_check_branch
          %555 = sbr.rel (%p552) target = $region169
        $region168: #{multires_hash_encoding.3} parent=152 // pred_region
          %v556 = vld [vmem:[%s484] sm:$0xf]
          %v557 = vld [vmem:[%s484 + $0x4] sm:$0xf]
          %v558 = vld [vmem:[%s484 + $0x8] sm:$0xf]
          %v559 = vld [vmem:[%s2] sm:$0xf]
          %563 = vst [vmem:[#allocation1] ss:$2 sm:$0xff] %v556
          %s564 = scalar_lea.vmem [#allocation1], 1
          %565 = vst [vmem:[%s564] ss:$2 sm:$0xff] %v557
          %s566 = scalar_lea.vmem [#allocation1], 16
          %567 = vst [vmem:[%s566] ss:$2 sm:$0xff] %v558
          %v568 = vld.sshfl [vmem:[#allocation1] sm:$0xff pattern:$0x75316420]
          %v569 = vld.sshfl [vmem:[#allocation1 + $0x10] sm:$0xff pattern:$0x75316420]
          %vm570 = vcmask 31744
          %v571 = vsel %vm570, %v568, 0
          %v573 = vsel %vm570, %v569, 0
          %vm575 = vcmask 1043456
          %v577 = vsel %vm575, %v559, 0
          %579 = vmatpush.msra.mxu0 0.0
          %580 = vmatpush.msra.mxu0 0.0
          %581 = vmatpush.msra.mxu0 0.0
          %582 = vmatpush.msra.mxu0 0.0
          %583 = vmatpush.msra.mxu0 0.0
          %584 = vmatpush.msra.mxu0 0.0
          %585 = vmatpush.msra.mxu0 0.0
          %586 = vmatpush.msra.mxu0 0.0
          %587 = vmatpush.msra.mxu0 0.0
          %588 = vmatpush.msra.mxu0 0.0
          %589 = vmatpush.msra.mxu0 0.0
          %590 = vmatpush.msra.mxu0 0.0
          %591 = vmatpush.msra.mxu0 0.0
          %592 = vmatpush.msra.mxu0 0.0
          %593 = vmatpush.msra.mxu0 0.0
          %594 = vmatpush.msra.mxu0 %v577
          %595 = vmatmul.f32.gmra.mxu0 %v571
          %v596 = vpop.f32.mrf.mxu0
          %v597 = vadd.f32 0.0, %v596
          %598 = vmatmul.f32.gmra.mxu0 %v573
          %v599 = vpop.f32.mrf.mxu0
          %v600 = vadd.f32 0.0, %v599
          %601 = vdwg.mxu0
          %v602 = vld [vmem:[%s1] sm:$0xff]
          %v603 = vld [vmem:[%s1 + $0x8] sm:$0xff]
          %v605 = vsel %vm570, %v602, 0
          %v608 = vsel %vm570, %v603, 0
          %v611 = vsel %vm575, %v597, 0
          %613 = vmatpush.msra.mxu0 0.0
          %614 = vmatpush.msra.mxu0 0.0
          %615 = vmatpush.msra.mxu0 0.0
          %616 = vmatpush.msra.mxu0 0.0
          %617 = vmatpush.msra.mxu0 0.0
          %618 = vmatpush.msra.mxu0 0.0
          %619 = vmatpush.msra.mxu0 0.0
          %620 = vmatpush.msra.mxu0 0.0
          %621 = vmatpush.msra.mxu0 0.0
          %622 = vmatpush.msra.mxu0 0.0
          %623 = vmatpush.msra.mxu0 0.0
          %624 = vmatpush.msra.mxu0 0.0
          %625 = vmatpush.msra.mxu0 0.0
          %626 = vmatpush.msra.mxu0 0.0
          %627 = vmatpush.msra.mxu0 0.0
          %628 = vmatpush.msra.mxu0 %v611
          %629 = vmatmul.f32.gmra.mxu0 %v605
          %v630 = vpop.f32.mrf.mxu0
          %v631 = vadd.f32 0.0, %v630
          %632 = vmatmul.f32.gmra.mxu0 %v608
          %v633 = vpop.f32.mrf.mxu0
          %v634 = vadd.f32 0.0, %v633
          %635 = vdwg.mxu0
          %vm636 = vcmask 130048
          %637 = vst.msk [vmem:[%s534] sm:$0xff] %vm636, %v631
          %638 = vst.msk [vmem:[%s534 + $0x8] sm:$0xff] %vm636, %v634
          %v639 = vrot.slane %v597, 4
          %v640 = vsel %vm575, %v639, 0
          %642 = vmatpush.msra.mxu0 0.0
          %643 = vmatpush.msra.mxu0 0.0
          %644 = vmatpush.msra.mxu0 0.0
          %645 = vmatpush.msra.mxu0 0.0
          %646 = vmatpush.msra.mxu0 0.0
          %647 = vmatpush.msra.mxu0 0.0
          %648 = vmatpush.msra.mxu0 0.0
          %649 = vmatpush.msra.mxu0 0.0
          %650 = vmatpush.msra.mxu0 0.0
          %651 = vmatpush.msra.mxu0 0.0
          %652 = vmatpush.msra.mxu0 0.0
          %653 = vmatpush.msra.mxu0 0.0
          %654 = vmatpush.msra.mxu0 0.0
          %655 = vmatpush.msra.mxu0 0.0
          %656 = vmatpush.msra.mxu0 0.0
          %657 = vmatpush.msra.mxu0 %v640
          %658 = vmatmul.f32.gmra.mxu0 %v605
          %v659 = vpop.f32.mrf.mxu0
          %v660 = vadd.f32 0.0, %v659
          %661 = vmatmul.f32.gmra.mxu0 %v608
          %v662 = vpop.f32.mrf.mxu0
          %v663 = vadd.f32 0.0, %v662
          %664 = vdwg.mxu0
          %s665 = scalar_lea.vmem %s534, 16 [#allocation5]
          %666 = vst.msk [vmem:[%s665] sm:$0xff] %vm636, %v660
          %667 = vst.msk [vmem:[%s665 + $0x8] sm:$0xff] %vm636, %v663
          %v669 = vsel %vm575, %v600, 0
          %671 = vmatpush.msra.mxu0 0.0
          %672 = vmatpush.msra.mxu0 0.0
          %673 = vmatpush.msra.mxu0 0.0
          %674 = vmatpush.msra.mxu0 0.0
          %675 = vmatpush.msra.mxu0 0.0
          %676 = vmatpush.msra.mxu0 0.0
          %677 = vmatpush.msra.mxu0 0.0
          %678 = vmatpush.msra.mxu0 0.0
          %679 = vmatpush.msra.mxu0 0.0
          %680 = vmatpush.msra.mxu0 0.0
          %681 = vmatpush.msra.mxu0 0.0
          %682 = vmatpush.msra.mxu0 0.0
          %683 = vmatpush.msra.mxu0 0.0
          %684 = vmatpush.msra.mxu0 0.0
          %685 = vmatpush.msra.mxu0 0.0
          %686 = vmatpush.msra.mxu0 %v669
          %687 = vmatmul.f32.gmra.mxu0 %v605
          %v688 = vpop.f32.mrf.mxu0
          %v689 = vadd.f32 0.0, %v688
          %690 = vmatmul.f32.gmra.mxu0 %v608
          %v691 = vpop.f32.mrf.mxu0
          %v692 = vadd.f32 0.0, %v691
          %693 = vdwg.mxu0
          %s694 = scalar_lea.vmem %s534, 32 [#allocation5]
          %695 = vst.msk [vmem:[%s694] sm:$0xff] %vm636, %v689
          %696 = vst.msk [vmem:[%s694 + $0x8] sm:$0xff] %vm636, %v692
        $region169: #{multires_hash_encoding.3} parent=152 // pred_fallthru
          _
        %p697 = scmp.ge.s32.totalorder %s26, 1
        %p698 = scmp.lt.s32.totalorder %s26, 2
        %p699 = pnand %p697, %p698
        %p700 = pneg %p699
        // Predicated region
        $region170: #{multires_hash_encoding.3} parent=152 // pred_check
          _
        $region171: #{multires_hash_encoding.3} parent=152 // pred_check_branch
          %702 = sbr.rel (%p699) target = $region173
        $region172: #{multires_hash_encoding.3} parent=152 // pred_region
          %v703 = vld [vmem:[%s491] sm:$0xff]
          %v704 = vld [vmem:[%s491 + $0x8] sm:$0xff]
          %v705 = vld [vmem:[%s491 + $0x10] sm:$0xff]
          %v706 = vld [vmem:[%s5] sm:$0xff]
          %vm707 = vcmask 64512
          %v709 = vsel %vm707, %v703, 0
          %v712 = vsel %vm707, %v704, 0
          %v715 = vsel %vm707, %v705, 0
          %717 = vmatpush.msra.mxu0 0.0
          %718 = vmatpush.msra.mxu0 0.0
          %719 = vmatpush.msra.mxu0 0.0
          %720 = vmatpush.msra.mxu0 0.0
          %721 = vmatpush.msra.mxu0 0.0
          %722 = vmatpush.msra.mxu0 0.0
          %723 = vmatpush.msra.mxu0 0.0
          %724 = vmatpush.msra.mxu0 0.0
          %725 = vmatpush.msra.mxu0 0.0
          %726 = vmatpush.msra.mxu0 0.0
          %727 = vmatpush.msra.mxu0 0.0
          %728 = vmatpush.msra.mxu0 0.0
          %729 = vmatpush.msra.mxu0 0.0
          %730 = vmatpush.msra.mxu0 0.0
          %731 = vmatpush.msra.mxu0 0.0
          %732 = vmatpush.msra.mxu0 %v706
          %733 = vmatmul.f32.gmra.mxu0 %v709
          %v734 = vpop.f32.mrf.mxu0
          %v735 = vadd.f32 0.0, %v734
          %736 = vmatmul.f32.gmra.mxu0 %v712
          %v737 = vpop.f32.mrf.mxu0
          %v738 = vadd.f32 0.0, %v737
          %739 = vmatmul.f32.gmra.mxu0 %v715
          %v740 = vpop.f32.mrf.mxu0
          %v741 = vadd.f32 0.0, %v740
          %742 = vdwg.mxu0
          %v743 = vld [vmem:[%s4] sm:$0xff]
          %v744 = vld [vmem:[%s4 + $0x8] sm:$0xff]
          %v746 = vsel %vm707, %v743, 0
          %v749 = vsel %vm707, %v744, 0
          %751 = vmatpush.msra.mxu0 0.0
          %752 = vmatpush.msra.mxu0 0.0
          %753 = vmatpush.msra.mxu0 0.0
          %754 = vmatpush.msra.mxu0 0.0
          %755 = vmatpush.msra.mxu0 0.0
          %756 = vmatpush.msra.mxu0 0.0
          %757 = vmatpush.msra.mxu0 0.0
          %758 = vmatpush.msra.mxu0 0.0
          %759 = vmatpush.msra.mxu0 0.0
          %760 = vmatpush.msra.mxu0 0.0
          %761 = vmatpush.msra.mxu0 0.0
          %762 = vmatpush.msra.mxu0 0.0
          %763 = vmatpush.msra.mxu0 0.0
          %764 = vmatpush.msra.mxu0 0.0
          %765 = vmatpush.msra.mxu0 0.0
          %766 = vmatpush.msra.mxu0 %v735
          %767 = vmatmul.f32.gmra.mxu0 %v746
          %v768 = vpop.f32.mrf.mxu0
          %v769 = vadd.f32 0.0, %v768
          %770 = vmatmul.f32.gmra.mxu0 %v749
          %v771 = vpop.f32.mrf.mxu0
          %v772 = vadd.f32 0.0, %v771
          %773 = vdwg.mxu0
          %vm774 = vcmask 130048
          %775 = vst.msk [vmem:[%s534] sm:$0xff] %vm774, %v769
          %776 = vst.msk [vmem:[%s534 + $0x8] sm:$0xff] %vm774, %v772
          %777 = vmatpush.msra.mxu0 0.0
          %778 = vmatpush.msra.mxu0 0.0
          %779 = vmatpush.msra.mxu0 0.0
          %780 = vmatpush.msra.mxu0 0.0
          %781 = vmatpush.msra.mxu0 0.0
          %782 = vmatpush.msra.mxu0 0.0
          %783 = vmatpush.msra.mxu0 0.0
          %784 = vmatpush.msra.mxu0 0.0
          %785 = vmatpush.msra.mxu0 0.0
          %786 = vmatpush.msra.mxu0 0.0
          %787 = vmatpush.msra.mxu0 0.0
          %788 = vmatpush.msra.mxu0 0.0
          %789 = vmatpush.msra.mxu0 0.0
          %790 = vmatpush.msra.mxu0 0.0
          %791 = vmatpush.msra.mxu0 0.0
          %792 = vmatpush.msra.mxu0 %v738
          %793 = vmatmul.f32.gmra.mxu0 %v746
          %v794 = vpop.f32.mrf.mxu0
          %v795 = vadd.f32 0.0, %v794
          %796 = vmatmul.f32.gmra.mxu0 %v749
          %v797 = vpop.f32.mrf.mxu0
          %v798 = vadd.f32 0.0, %v797
          %799 = vdwg.mxu0
          %s800 = scalar_lea.vmem %s534, 16 [#allocation5]
          %801 = vst.msk [vmem:[%s800] sm:$0xff] %vm774, %v795
          %802 = vst.msk [vmem:[%s800 + $0x8] sm:$0xff] %vm774, %v798
          %803 = vmatpush.msra.mxu0 0.0
          %804 = vmatpush.msra.mxu0 0.0
          %805 = vmatpush.msra.mxu0 0.0
          %806 = vmatpush.msra.mxu0 0.0
          %807 = vmatpush.msra.mxu0 0.0
          %808 = vmatpush.msra.mxu0 0.0
          %809 = vmatpush.msra.mxu0 0.0
          %810 = vmatpush.msra.mxu0 0.0
          %811 = vmatpush.msra.mxu0 0.0
          %812 = vmatpush.msra.mxu0 0.0
          %813 = vmatpush.msra.mxu0 0.0
          %814 = vmatpush.msra.mxu0 0.0
          %815 = vmatpush.msra.mxu0 0.0
          %816 = vmatpush.msra.mxu0 0.0
          %817 = vmatpush.msra.mxu0 0.0
          %818 = vmatpush.msra.mxu0 %v741
          %819 = vmatmul.f32.gmra.mxu0 %v746
          %v820 = vpop.f32.mrf.mxu0
          %v821 = vadd.f32 0.0, %v820
          %822 = vmatmul.f32.gmra.mxu0 %v749
          %v823 = vpop.f32.mrf.mxu0
          %v824 = vadd.f32 0.0, %v823
          %825 = vdwg.mxu0
          %s826 = scalar_lea.vmem %s534, 32 [#allocation5]
          %827 = vst.msk [vmem:[%s826] sm:$0xff] %vm774, %v821
          %828 = vst.msk [vmem:[%s826 + $0x8] sm:$0xff] %vm774, %v824
        $region173: #{multires_hash_encoding.3} parent=152 // pred_fallthru
          _
        %p829 = scmp.ge.s32.totalorder %s26, 2
        %p830 = scmp.lt.s32.totalorder %s26, 4
        %p831 = pnand %p829, %p830
        %p832 = pneg %p831
        // Predicated region
        $region174: #{multires_hash_encoding.3} parent=152 // pred_check
          _
        $region175: #{multires_hash_encoding.3} parent=152 // pred_check_branch
          %834 = sbr.rel (%p831) target = $region177
        $region176: #{multires_hash_encoding.3} parent=152 // pred_region
          %v835 = vld [vmem:[%s498] sm:$0xff]
          %v836 = vld [vmem:[%s498 + $0x8] sm:$0xff]
          %v837 = vld [vmem:[%s498 + $0x10] sm:$0xff]
          %v838 = vld [vmem:[%s498 + $0x18] sm:$0xff]
          %v839 = vld [vmem:[%s498 + $0x20] sm:$0xff]
          %v840 = vld [vmem:[%s498 + $0x28] sm:$0xff]
          %vm841 = vcmask 130048
          %842 = vst.msk [vmem:[%s534] sm:$0xff] %vm841, %v835
          %843 = vst.msk [vmem:[%s534 + $0x8] sm:$0xff] %vm841, %v836
          %844 = vst.msk [vmem:[%s534 + $0x10] sm:$0xff] %vm841, %v837
          %845 = vst.msk [vmem:[%s534 + $0x18] sm:$0xff] %vm841, %v838
          %846 = vst.msk [vmem:[%s534 + $0x20] sm:$0xff] %vm841, %v839
          %847 = vst.msk [vmem:[%s534 + $0x28] sm:$0xff] %vm841, %v840
        $region177: #{multires_hash_encoding.3} parent=152 // pred_fallthru
          _
        %s848 = sand.u32 %s239, 1
        %s849 = scalar_lea.sflag [#allocation6], %s848
        %s850 = sand.u32 %s239, 1
        %s851 = smul.addr %s850, 48
        %s852 = scalar_lea.vmem [#allocation5], %s851
        // Predicated region
        $region178: #{multires_hash_encoding.3} parent=152 // pred_check
          %p853 = pneg %p249
        $region179: #{multires_hash_encoding.3} parent=152 // pred_check_branch
          %855 = sbr.rel (%p853) target = $region181
        $region180: #{multires_hash_encoding.3} parent=152 // pred_region
          %s856 = smul.u32 3, %s26
          %858 = vsyncadd %s849, 0
          %s859 = smul.addr %s856, 2
          %s860 = smul.addr %s25, 24
          %s861 = sadd.s32 %s859, %s860
          %s862 = smul.addr %s861, 8
          %s863 = scalar_lea.hbm %s7, %s862
          %s864 = sshll.u32 %s852, 4
          %s865 = int_to_ptr.vmem [resolvable:$true] %s864
          %s866 = sshll.u32 %s863, 4
          %s867 = int_to_ptr.hbm [resolvable:$true] %s866
          %872 = dma.vmem_to_hbm [thread:$0]  %s865, 768, %s867, %s849, 128, 128, 8
        $region181: #{multires_hash_encoding.3} parent=152 // pred_fallthru
          _
      $region153: #{multires_hash_encoding.3} parent=5 // pred_fallthru
        _
      %p873 = scmp.le.s32.totalorder 2, %s16
      // Predicated region
      $region182: #{multires_hash_encoding.3} parent=5 // pred_check
        %p874 = pneg %p873
      $region183: #{multires_hash_encoding.3} parent=5 // pred_check_branch
        %876 = sbr.rel (%p874) target = $region185
      $region184: #{multires_hash_encoding.3} parent=5 // pred_region
        %s877 = ssub.s32 %s16, 2
        // Predicated region
        $region186: #{multires_hash_encoding.3} parent=184 // pred_check
          %p878 = pneg %p255
        $region187: #{multires_hash_encoding.3} parent=184 // pred_check_branch
          %880 = sbr.rel (%p878) target = $region189
        $region188: #{multires_hash_encoding.3} parent=184 // pred_region
          %s881 = sand.u32 %s240, 1
          %s882 = scalar_lea.sflag [#allocation6], %s881
          %s883 = sand.u32 %s240, 1
          %s884 = smul.addr %s883, 48
          %s885 = scalar_lea.vmem [#allocation5], %s884
          %887 = dma.done %s882, 768
        $region189: #{multires_hash_encoding.3} parent=184 // pred_fallthru
          _
      $region185: #{multires_hash_encoding.3} parent=5 // pred_fallthru
        _
    $region6: #{multires_hash_encoding.3} parent=1 // loop_footer
      %s20 = sadd.s32 1, %s16
    $region7: #{multires_hash_encoding.3} parent=1 // loop_footer_branch
      %15 = sbr.rel target = $region3
    $region8: #{multires_hash_encoding.3} parent=1 // loop_exit
      _
    %888 = vsyncpa [#allocation6], 1
    %s889 = scalar_lea.sflag [#allocation6], 1
    %890 = vsyncpa %s889, 1

</llo_original>
